<compile_context>
chip_gen: v7x
topology: tpu7x:2x2x1
jax: 0.10.0
libtpu: 0.0.40
codegen_flags: <defaults>
</compile_context>

<pallas_src>
import functools

import jax
import jax.numpy as jnp
from jax.experimental import pallas as pl
from jax.experimental.pallas import tpu as pltpu

BN_EPS = 1e-5


def c2f_bottleneck_kernel(x_ref, hh_ref, ww_ref,
                          w1_ref, g1_ref, b1_ref,
                          w2_ref, g2_ref, b2_ref,
                          out_ref, *, H, W, lane_pad, add):
    # x_ref   : (C1p, L)       activation, L = N*H*W on lanes, channels padded
    # hh/ww   : (1, L) int32   spatial row / col coordinate of each position
    # w1_ref  : (Cmp, 9*C1p)   conv1 weights, rows tap-major (tap*Cin + ci)
    # g1/b1   : (Cmp, 1)       BN1 gamma / beta
    # w2_ref  : (C2p, 9*Cmp)
    # g2/b2   : (C2p, 1)
    # out_ref : (C2p, L)
    _, L = x_ref.shape
    inv_l = 1.0 / float(L)

    hh = hh_ref[...]
    ww = ww_ref[...]

    # 3x3 tap validity masks (shared by both convs, computed once).
    masks = []
    for tap in range(9):
        oy, ox = tap // 3 - 1, tap % 3 - 1
        masks.append((hh >= -oy) & (hh < H - oy) & (ww >= -ox) & (ww < W - ox))

    def conv3x3(act, w):
        # act: (Cin_pad, L) f32, w: (Cout_pad, 9*Cin_pad) f32 -> (Cout_pad, L) f32
        cin = act.shape[0]
        zpad = jnp.zeros((cin, lane_pad), jnp.float32)
        act_p = jnp.concatenate([zpad, act, zpad], axis=1)   # 128-aligned lane pad
        taps = []
        for tap in range(9):
            oy, ox = tap // 3 - 1, tap % 3 - 1
            start = lane_pad + oy * W + ox
            shifted = act_p[:, start:start + L]              # static lane shift
            taps.append(jnp.where(masks[tap], shifted, 0.0))
        patches = jnp.concatenate(taps, axis=0)              # (9*Cin_pad, L) im2col
        return jnp.dot(w, patches, preferred_element_type=jnp.float32)

    def bn_elu(acc, g, b):
        # Single-pass batch stats (sum + sumsq), affine folded to scale+bias.
        s = jnp.sum(acc, axis=1, keepdims=True)
        ss = jnp.sum(acc * acc, axis=1, keepdims=True)
        mean = s * inv_l
        var = jnp.maximum(ss * inv_l - mean * mean, 0.0)
        scale = g * jax.lax.rsqrt(var + BN_EPS)
        bias = b - mean * scale
        y = acc * scale + bias
        # nn.ELU(alpha=1.0).  exp(x)-1 keeps the Mosaic lowering simple; the
        # expm1 precision delta is ~1e-7 in f32, far below tolerance.
        return jnp.where(y > 0, y, jnp.exp(y) - 1.0)

    x = x_ref[...].astype(jnp.float32)
    y1 = bn_elu(conv3x3(x, w1_ref[...]), g1_ref[...], b1_ref[...])
    y2 = bn_elu(conv3x3(y1, w2_ref[...]), g2_ref[...], b2_ref[...])
    if add:                                   # shortcut (c1 == c2)
        y2 = y2 + x
    out_ref[...] = y2.astype(out_ref.dtype)


def _round_up(v, m):
    return (v + m - 1) // m * m


def c2f_bottleneck(x_nchw, w1_oihw, g1, b1, w2_oihw, g2, b2, *, add=True):
    """x: (N,C1,H,W); w1: (Cm,C1,3,3); w2: (C2,Cm,3,3); g*/b*: per-channel."""
    N, C1, H, W = x_nchw.shape
    Cm, C2 = w1_oihw.shape[0], w2_oihw.shape[0]
    L = N * H * W

    # Pad channel dims to the f32 sublane tile (8) so the in-kernel im2col
    # concatenation is tile-aligned; dummy channels carry exact zeros.
    C1p, Cmp, C2p = (_round_up(c, 8) for c in (C1, Cm, C2))
    lane_pad = _round_up(W + 1, 128)      # lane padding used for the tap shifts

    # Lane-dense activation layout: (C1p, N*H*W).
    x_cl = jnp.transpose(x_nchw, (1, 0, 2, 3)).reshape(C1, L)
    x_cl = jnp.pad(x_cl, ((0, C1p - C1), (0, 0)))

    # (Cout, Cin, 3, 3) -> (Cout_pad, 9*Cin_pad), rows tap-major to match the
    # in-kernel patch layout.
    def pack_w(w, cop, cip):
        co, ci = w.shape[0], w.shape[1]
        wt = jnp.transpose(w, (0, 2, 3, 1))                   # (co, 3, 3, ci)
        wt = jnp.pad(wt, ((0, cop - co), (0, 0), (0, 0), (0, cip - ci)))
        return wt.reshape(cop, 9 * cip).astype(jnp.float32)

    w1 = pack_w(w1_oihw, Cmp, C1p)
    w2 = pack_w(w2_oihw, C2p, Cmp)

    def pack_gb(g, b, cp):
        c = g.shape[0]
        g_ = jnp.pad(g.reshape(c, 1).astype(jnp.float32),
                     ((0, cp - c), (0, 0)), constant_values=1.0)
        b_ = jnp.pad(b.reshape(c, 1).astype(jnp.float32), ((0, cp - c), (0, 0)))
        return g_, b_

    g1_, b1_ = pack_gb(g1, b1, Cmp)
    g2_, b2_ = pack_gb(g2, b2, C2p)

    # Spatial coordinates of every flattened position (for the 3x3 masks).
    pos = jnp.arange(L, dtype=jnp.int32)
    hh = ((pos % (H * W)) // W).reshape(1, L)
    ww = (pos % W).reshape(1, L)

    def full(shape):
        nd = len(shape)
        return pl.BlockSpec(shape, lambda i, _nd=nd: (0,) * _nd)

    kernel = functools.partial(c2f_bottleneck_kernel,
                               H=H, W=W, lane_pad=lane_pad, add=add)
    out_cl = pl.pallas_call(
        kernel,
        out_shape=jax.ShapeDtypeStruct((C2p, L), x_nchw.dtype),
        grid_spec=pltpu.PrefetchScalarGridSpec(
            num_scalar_prefetch=0,
            grid=(1,),
            in_specs=[full(x_cl.shape), full(hh.shape), full(ww.shape),
                      full(w1.shape), full(g1_.shape), full(b1_.shape),
                      full(w2.shape), full(g2_.shape), full(b2_.shape)],
            out_specs=full((C2p, L)),
        ),
        compiler_params=pltpu.CompilerParams(
            dimension_semantics=("arbitrary",)),
    )(x_cl, hh, ww, w1, g1_, b1_, w2, g2_, b2_)

    # TODO(synk): for YOLO-scale activations, tile N/H with a stats+apply
    # two-pass grid (marked "parallel" for v7x megacore) and bf16 matmul
    # inputs; at these small shapes the whole problem is VMEM-resident and BN
    # batch statistics need a global reduction, so one grid step is optimal.
    return jnp.transpose(out_cl[:C2].reshape(C2, N, H, W), (1, 0, 2, 3))


# ---------------- pure-JAX reference (for correctness check) ----------------
def _ref_forward(x_nchw, w1_oihw, g1, b1, w2_oihw, g2, b2, add):
    def conv_bn_elu(x, w, g, b):
        y = jax.lax.conv_general_dilated(
            x, w, window_strides=(1, 1), padding=((1, 1), (1, 1)),
            dimension_numbers=("NCHW", "OIHW", "NCHW"))
        mean = y.mean(axis=(0, 2, 3), keepdims=True)
        var = ((y - mean) ** 2).mean(axis=(0, 2, 3), keepdims=True)
        yn = (y - mean) / jnp.sqrt(var + BN_EPS)
        yn = yn * g.reshape(1, -1, 1, 1) + b.reshape(1, -1, 1, 1)
        return jnp.where(yn > 0, yn, jnp.exp(yn) - 1.0)

    y = conv_bn_elu(conv_bn_elu(x_nchw, w1_oihw, g1, b1), w2_oihw, g2, b2)
    return x_nchw + y if add else y


if __name__ == "__main__":
    # C2FBottleneck(c1=4, c2=4, shortcut=True, k=(3,3), e=0.5)  -> c_ = 2
    N, C1, H, W = 2, 4, 16, 16
    C2 = 4
    Cm = int(C2 * 0.5)
    add = True and (C1 == C2)

    key = jax.random.PRNGKey(0)
    kx, kw1, kw2, kg1, kb1, kg2, kb2 = jax.random.split(key, 7)

    x_nchw = jax.random.normal(kx, (N, C1, H, W), jnp.float32)
    # PyTorch Conv2d weight layout: (out, in, kh, kw)
    w1_oihw = jax.random.normal(kw1, (Cm, C1, 3, 3), jnp.float32) * 0.2
    w2_oihw = jax.random.normal(kw2, (C2, Cm, 3, 3), jnp.float32) * 0.2
    g1 = 1.0 + 0.1 * jax.random.normal(kg1, (Cm,), jnp.float32)
    b1 = 0.1 * jax.random.normal(kb1, (Cm,), jnp.float32)
    g2 = 1.0 + 0.1 * jax.random.normal(kg2, (C2,), jnp.float32)
    b2 = 0.1 * jax.random.normal(kb2, (C2,), jnp.float32)

    out = c2f_bottleneck(x_nchw, w1_oihw, g1, b1, w2_oihw, g2, b2, add=add)
    out = jax.block_until_ready(out)

    ref = _ref_forward(x_nchw, w1_oihw, g1, b1, w2_oihw, g2, b2, add)
    err = float(jnp.max(jnp.abs(out - ref)))
    if err > 3e-2:
        raise AssertionError(f"Pallas kernel mismatch vs reference: max |err| = {err}")

    print("KERNEL_OK")
</pallas_src>

<mosaic_0001>
module attributes {stable_mosaic.version = 11 : i64} {
  func.func @c2f_bottleneck_kernel(%arg0: i32, %arg1: memref<8x512xf32, #tpu.memory_space<vmem>>, %arg2: memref<1x512xi32, #tpu.memory_space<vmem>>, %arg3: memref<1x512xi32, #tpu.memory_space<vmem>>, %arg4: memref<8x72xf32, #tpu.memory_space<vmem>>, %arg5: memref<8x1xf32, #tpu.memory_space<vmem>>, %arg6: memref<8x1xf32, #tpu.memory_space<vmem>>, %arg7: memref<8x72xf32, #tpu.memory_space<vmem>>, %arg8: memref<8x1xf32, #tpu.memory_space<vmem>>, %arg9: memref<8x1xf32, #tpu.memory_space<vmem>>, %arg10: memref<8x512xf32, #tpu.memory_space<vmem>>) attributes {dimension_semantics = [#tpu.dimension_semantics<arbitrary>], iteration_bounds = array<i64: 1>, scalar_prefetch = 0 : i64, scratch_operands = 0 : i64, tpu.core_type = #tpu.core_type<tc>, window_params = [{pipeline_mode = #tpu.pipeline_mode<synchronous>, transform_indices = @transform_0, window_bounds = array<i64: 8, 512>}, {pipeline_mode = #tpu.pipeline_mode<synchronous>, transform_indices = @transform_1, window_bounds = array<i64: 1, 512>}, {pipeline_mode = #tpu.pipeline_mode<synchronous>, transform_indices = @transform_2, window_bounds = array<i64: 1, 512>}, {pipeline_mode = #tpu.pipeline_mode<synchronous>, transform_indices = @transform_3, window_bounds = array<i64: 8, 72>}, {pipeline_mode = #tpu.pipeline_mode<synchronous>, transform_indices = @transform_4, window_bounds = array<i64: 8, 1>}, {pipeline_mode = #tpu.pipeline_mode<synchronous>, transform_indices = @transform_5, window_bounds = array<i64: 8, 1>}, {pipeline_mode = #tpu.pipeline_mode<synchronous>, transform_indices = @transform_6, window_bounds = array<i64: 8, 72>}, {pipeline_mode = #tpu.pipeline_mode<synchronous>, transform_indices = @transform_7, window_bounds = array<i64: 8, 1>}, {pipeline_mode = #tpu.pipeline_mode<synchronous>, transform_indices = @transform_8, window_bounds = array<i64: 8, 1>}, {pipeline_mode = #tpu.pipeline_mode<synchronous>, transform_indices = @transform_9, window_bounds = array<i64: 8, 512>}]} {
    %c0 = arith.constant 0 : index
    %c0_0 = arith.constant 0 : index
    %0 = vector.load %arg2[%c0, %c0_0] : memref<1x512xi32, #tpu.memory_space<vmem>>, vector<1x512xi32>
    %c0_1 = arith.constant 0 : index
    %c0_2 = arith.constant 0 : index
    %1 = vector.load %arg3[%c0_1, %c0_2] : memref<1x512xi32, #tpu.memory_space<vmem>>, vector<1x512xi32>
    %c1_i32 = arith.constant 1 : i32
    %2 = vector.broadcast %c1_i32 : i32 to vector<1x512xi32>
    %3 = arith.cmpi sge, %0, %2 : vector<1x512xi32>
    %c17_i32 = arith.constant 17 : i32
    %4 = vector.broadcast %c17_i32 : i32 to vector<1x512xi32>
    %5 = arith.cmpi slt, %0, %4 : vector<1x512xi32>
    %6 = arith.andi %3, %5 : vector<1x512xi1>
    %c1_i32_3 = arith.constant 1 : i32
    %7 = vector.broadcast %c1_i32_3 : i32 to vector<1x512xi32>
    %8 = arith.cmpi sge, %1, %7 : vector<1x512xi32>
    %9 = arith.andi %6, %8 : vector<1x512xi1>
    %c17_i32_4 = arith.constant 17 : i32
    %10 = vector.broadcast %c17_i32_4 : i32 to vector<1x512xi32>
    %11 = arith.cmpi slt, %1, %10 : vector<1x512xi32>
    %12 = arith.andi %9, %11 : vector<1x512xi1>
    %c1_i32_5 = arith.constant 1 : i32
    %13 = vector.broadcast %c1_i32_5 : i32 to vector<1x512xi32>
    %14 = arith.cmpi sge, %0, %13 : vector<1x512xi32>
    %c17_i32_6 = arith.constant 17 : i32
    %15 = vector.broadcast %c17_i32_6 : i32 to vector<1x512xi32>
    %16 = arith.cmpi slt, %0, %15 : vector<1x512xi32>
    %17 = arith.andi %14, %16 : vector<1x512xi1>
    %c0_i32 = arith.constant 0 : i32
    %18 = vector.broadcast %c0_i32 : i32 to vector<1x512xi32>
    %19 = arith.cmpi sge, %1, %18 : vector<1x512xi32>
    %20 = arith.andi %17, %19 : vector<1x512xi1>
    %c16_i32 = arith.constant 16 : i32
    %21 = vector.broadcast %c16_i32 : i32 to vector<1x512xi32>
    %22 = arith.cmpi slt, %1, %21 : vector<1x512xi32>
    %23 = arith.andi %20, %22 : vector<1x512xi1>
    %c1_i32_7 = arith.constant 1 : i32
    %24 = vector.broadcast %c1_i32_7 : i32 to vector<1x512xi32>
    %25 = arith.cmpi sge, %0, %24 : vector<1x512xi32>
    %c17_i32_8 = arith.constant 17 : i32
    %26 = vector.broadcast %c17_i32_8 : i32 to vector<1x512xi32>
    %27 = arith.cmpi slt, %0, %26 : vector<1x512xi32>
    %28 = arith.andi %25, %27 : vector<1x512xi1>
    %c-1_i32 = arith.constant -1 : i32
    %29 = vector.broadcast %c-1_i32 : i32 to vector<1x512xi32>
    %30 = arith.cmpi sge, %1, %29 : vector<1x512xi32>
    %31 = arith.andi %28, %30 : vector<1x512xi1>
    %c15_i32 = arith.constant 15 : i32
    %32 = vector.broadcast %c15_i32 : i32 to vector<1x512xi32>
    %33 = arith.cmpi slt, %1, %32 : vector<1x512xi32>
    %34 = arith.andi %31, %33 : vector<1x512xi1>
    %c0_i32_9 = arith.constant 0 : i32
    %35 = vector.broadcast %c0_i32_9 : i32 to vector<1x512xi32>
    %36 = arith.cmpi sge, %0, %35 : vector<1x512xi32>
    %c16_i32_10 = arith.constant 16 : i32
    %37 = vector.broadcast %c16_i32_10 : i32 to vector<1x512xi32>
    %38 = arith.cmpi slt, %0, %37 : vector<1x512xi32>
    %39 = arith.andi %36, %38 : vector<1x512xi1>
    %c1_i32_11 = arith.constant 1 : i32
    %40 = vector.broadcast %c1_i32_11 : i32 to vector<1x512xi32>
    %41 = arith.cmpi sge, %1, %40 : vector<1x512xi32>
    %42 = arith.andi %39, %41 : vector<1x512xi1>
    %c17_i32_12 = arith.constant 17 : i32
    %43 = vector.broadcast %c17_i32_12 : i32 to vector<1x512xi32>
    %44 = arith.cmpi slt, %1, %43 : vector<1x512xi32>
    %45 = arith.andi %42, %44 : vector<1x512xi1>
    %c0_i32_13 = arith.constant 0 : i32
    %46 = vector.broadcast %c0_i32_13 : i32 to vector<1x512xi32>
    %47 = arith.cmpi sge, %0, %46 : vector<1x512xi32>
    %c16_i32_14 = arith.constant 16 : i32
    %48 = vector.broadcast %c16_i32_14 : i32 to vector<1x512xi32>
    %49 = arith.cmpi slt, %0, %48 : vector<1x512xi32>
    %50 = arith.andi %47, %49 : vector<1x512xi1>
    %c0_i32_15 = arith.constant 0 : i32
    %51 = vector.broadcast %c0_i32_15 : i32 to vector<1x512xi32>
    %52 = arith.cmpi sge, %1, %51 : vector<1x512xi32>
    %53 = arith.andi %50, %52 : vector<1x512xi1>
    %c16_i32_16 = arith.constant 16 : i32
    %54 = vector.broadcast %c16_i32_16 : i32 to vector<1x512xi32>
    %55 = arith.cmpi slt, %1, %54 : vector<1x512xi32>
    %56 = arith.andi %53, %55 : vector<1x512xi1>
    %c0_i32_17 = arith.constant 0 : i32
    %57 = vector.broadcast %c0_i32_17 : i32 to vector<1x512xi32>
    %58 = arith.cmpi sge, %0, %57 : vector<1x512xi32>
    %c16_i32_18 = arith.constant 16 : i32
    %59 = vector.broadcast %c16_i32_18 : i32 to vector<1x512xi32>
    %60 = arith.cmpi slt, %0, %59 : vector<1x512xi32>
    %61 = arith.andi %58, %60 : vector<1x512xi1>
    %c-1_i32_19 = arith.constant -1 : i32
    %62 = vector.broadcast %c-1_i32_19 : i32 to vector<1x512xi32>
    %63 = arith.cmpi sge, %1, %62 : vector<1x512xi32>
    %64 = arith.andi %61, %63 : vector<1x512xi1>
    %c15_i32_20 = arith.constant 15 : i32
    %65 = vector.broadcast %c15_i32_20 : i32 to vector<1x512xi32>
    %66 = arith.cmpi slt, %1, %65 : vector<1x512xi32>
    %67 = arith.andi %64, %66 : vector<1x512xi1>
    %c-1_i32_21 = arith.constant -1 : i32
    %68 = vector.broadcast %c-1_i32_21 : i32 to vector<1x512xi32>
    %69 = arith.cmpi sge, %0, %68 : vector<1x512xi32>
    %c15_i32_22 = arith.constant 15 : i32
    %70 = vector.broadcast %c15_i32_22 : i32 to vector<1x512xi32>
    %71 = arith.cmpi slt, %0, %70 : vector<1x512xi32>
    %72 = arith.andi %69, %71 : vector<1x512xi1>
    %c1_i32_23 = arith.constant 1 : i32
    %73 = vector.broadcast %c1_i32_23 : i32 to vector<1x512xi32>
    %74 = arith.cmpi sge, %1, %73 : vector<1x512xi32>
    %75 = arith.andi %72, %74 : vector<1x512xi1>
    %c17_i32_24 = arith.constant 17 : i32
    %76 = vector.broadcast %c17_i32_24 : i32 to vector<1x512xi32>
    %77 = arith.cmpi slt, %1, %76 : vector<1x512xi32>
    %78 = arith.andi %75, %77 : vector<1x512xi1>
    %c-1_i32_25 = arith.constant -1 : i32
    %79 = vector.broadcast %c-1_i32_25 : i32 to vector<1x512xi32>
    %80 = arith.cmpi sge, %0, %79 : vector<1x512xi32>
    %c15_i32_26 = arith.constant 15 : i32
    %81 = vector.broadcast %c15_i32_26 : i32 to vector<1x512xi32>
    %82 = arith.cmpi slt, %0, %81 : vector<1x512xi32>
    %83 = arith.andi %80, %82 : vector<1x512xi1>
    %c0_i32_27 = arith.constant 0 : i32
    %84 = vector.broadcast %c0_i32_27 : i32 to vector<1x512xi32>
    %85 = arith.cmpi sge, %1, %84 : vector<1x512xi32>
    %86 = arith.andi %83, %85 : vector<1x512xi1>
    %c16_i32_28 = arith.constant 16 : i32
    %87 = vector.broadcast %c16_i32_28 : i32 to vector<1x512xi32>
    %88 = arith.cmpi slt, %1, %87 : vector<1x512xi32>
    %89 = arith.andi %86, %88 : vector<1x512xi1>
    %c-1_i32_29 = arith.constant -1 : i32
    %90 = vector.broadcast %c-1_i32_29 : i32 to vector<1x512xi32>
    %91 = arith.cmpi sge, %0, %90 : vector<1x512xi32>
    %c15_i32_30 = arith.constant 15 : i32
    %92 = vector.broadcast %c15_i32_30 : i32 to vector<1x512xi32>
    %93 = arith.cmpi slt, %0, %92 : vector<1x512xi32>
    %94 = arith.andi %91, %93 : vector<1x512xi1>
    %c-1_i32_31 = arith.constant -1 : i32
    %95 = vector.broadcast %c-1_i32_31 : i32 to vector<1x512xi32>
    %96 = arith.cmpi sge, %1, %95 : vector<1x512xi32>
    %97 = arith.andi %94, %96 : vector<1x512xi1>
    %c15_i32_32 = arith.constant 15 : i32
    %98 = vector.broadcast %c15_i32_32 : i32 to vector<1x512xi32>
    %99 = arith.cmpi slt, %1, %98 : vector<1x512xi32>
    %100 = arith.andi %97, %99 : vector<1x512xi1>
    %c0_33 = arith.constant 0 : index
    %c0_34 = arith.constant 0 : index
    %101 = vector.load %arg1[%c0_33, %c0_34] : memref<8x512xf32, #tpu.memory_space<vmem>>, vector<8x512xf32>
    %c0_35 = arith.constant 0 : index
    %c0_36 = arith.constant 0 : index
    %102 = vector.load %arg4[%c0_35, %c0_36] : memref<8x72xf32, #tpu.memory_space<vmem>>, vector<8x72xf32>
    %cst = arith.constant 0.000000e+00 : f32
    %103 = vector.broadcast %cst : f32 to vector<8x128xf32>
    %104 = tpu.concatenate %103, %101, %103 in 1 : vector<8x128xf32>, vector<8x512xf32>, vector<8x128xf32> -> vector<8x768xf32>
    %105 = vector.extract_strided_slice %104 {offsets = [0, 111], sizes = [8, 512], strides = [1, 1]} : vector<8x768xf32> to vector<8x512xf32>
    %cst_37 = arith.constant 0.000000e+00 : f32
    %106 = vector.shape_cast %12 : vector<1x512xi1> to vector<1x512xi1>
    %107 = vector.broadcast %106 : vector<1x512xi1> to vector<8x512xi1>
    %108 = vector.broadcast %cst_37 : f32 to vector<8x512xf32>
    %109 = arith.select %107, %105, %108 : vector<8x512xi1>, vector<8x512xf32>
    %110 = vector.extract_strided_slice %104 {offsets = [0, 112], sizes = [8, 512], strides = [1, 1]} : vector<8x768xf32> to vector<8x512xf32>
    %cst_38 = arith.constant 0.000000e+00 : f32
    %111 = vector.shape_cast %23 : vector<1x512xi1> to vector<1x512xi1>
    %112 = vector.broadcast %111 : vector<1x512xi1> to vector<8x512xi1>
    %113 = vector.broadcast %cst_38 : f32 to vector<8x512xf32>
    %114 = arith.select %112, %110, %113 : vector<8x512xi1>, vector<8x512xf32>
    %115 = vector.extract_strided_slice %104 {offsets = [0, 113], sizes = [8, 512], strides = [1, 1]} : vector<8x768xf32> to vector<8x512xf32>
    %cst_39 = arith.constant 0.000000e+00 : f32
    %116 = vector.shape_cast %34 : vector<1x512xi1> to vector<1x512xi1>
    %117 = vector.broadcast %116 : vector<1x512xi1> to vector<8x512xi1>
    %118 = vector.broadcast %cst_39 : f32 to vector<8x512xf32>
    %119 = arith.select %117, %115, %118 : vector<8x512xi1>, vector<8x512xf32>
    %120 = vector.extract_strided_slice %104 {offsets = [0, 127], sizes = [8, 512], strides = [1, 1]} : vector<8x768xf32> to vector<8x512xf32>
    %cst_40 = arith.constant 0.000000e+00 : f32
    %121 = vector.shape_cast %45 : vector<1x512xi1> to vector<1x512xi1>
    %122 = vector.broadcast %121 : vector<1x512xi1> to vector<8x512xi1>
    %123 = vector.broadcast %cst_40 : f32 to vector<8x512xf32>
    %124 = arith.select %122, %120, %123 : vector<8x512xi1>, vector<8x512xf32>
    %125 = vector.extract_strided_slice %104 {offsets = [0, 128], sizes = [8, 512], strides = [1, 1]} : vector<8x768xf32> to vector<8x512xf32>
    %cst_41 = arith.constant 0.000000e+00 : f32
    %126 = vector.shape_cast %56 : vector<1x512xi1> to vector<1x512xi1>
    %127 = vector.broadcast %126 : vector<1x512xi1> to vector<8x512xi1>
    %128 = vector.broadcast %cst_41 : f32 to vector<8x512xf32>
    %129 = arith.select %127, %125, %128 : vector<8x512xi1>, vector<8x512xf32>
    %130 = vector.extract_strided_slice %104 {offsets = [0, 129], sizes = [8, 512], strides = [1, 1]} : vector<8x768xf32> to vector<8x512xf32>
    %cst_42 = arith.constant 0.000000e+00 : f32
    %131 = vector.shape_cast %67 : vector<1x512xi1> to vector<1x512xi1>
    %132 = vector.broadcast %131 : vector<1x512xi1> to vector<8x512xi1>
    %133 = vector.broadcast %cst_42 : f32 to vector<8x512xf32>
    %134 = arith.select %132, %130, %133 : vector<8x512xi1>, vector<8x512xf32>
    %135 = vector.extract_strided_slice %104 {offsets = [0, 143], sizes = [8, 512], strides = [1, 1]} : vector<8x768xf32> to vector<8x512xf32>
    %cst_43 = arith.constant 0.000000e+00 : f32
    %136 = vector.shape_cast %78 : vector<1x512xi1> to vector<1x512xi1>
    %137 = vector.broadcast %136 : vector<1x512xi1> to vector<8x512xi1>
    %138 = vector.broadcast %cst_43 : f32 to vector<8x512xf32>
    %139 = arith.select %137, %135, %138 : vector<8x512xi1>, vector<8x512xf32>
    %140 = vector.extract_strided_slice %104 {offsets = [0, 144], sizes = [8, 512], strides = [1, 1]} : vector<8x768xf32> to vector<8x512xf32>
    %cst_44 = arith.constant 0.000000e+00 : f32
    %141 = vector.shape_cast %89 : vector<1x512xi1> to vector<1x512xi1>
    %142 = vector.broadcast %141 : vector<1x512xi1> to vector<8x512xi1>
    %143 = vector.broadcast %cst_44 : f32 to vector<8x512xf32>
    %144 = arith.select %142, %140, %143 : vector<8x512xi1>, vector<8x512xf32>
    %145 = vector.extract_strided_slice %104 {offsets = [0, 145], sizes = [8, 512], strides = [1, 1]} : vector<8x768xf32> to vector<8x512xf32>
    %cst_45 = arith.constant 0.000000e+00 : f32
    %146 = vector.shape_cast %100 : vector<1x512xi1> to vector<1x512xi1>
    %147 = vector.broadcast %146 : vector<1x512xi1> to vector<8x512xi1>
    %148 = vector.broadcast %cst_45 : f32 to vector<8x512xf32>
    %149 = arith.select %147, %145, %148 : vector<8x512xi1>, vector<8x512xf32>
    %150 = tpu.concatenate %109, %114, %119, %124, %129, %134, %139, %144, %149 in 0 : vector<8x512xf32>, vector<8x512xf32>, vector<8x512xf32>, vector<8x512xf32>, vector<8x512xf32>, vector<8x512xf32>, vector<8x512xf32>, vector<8x512xf32>, vector<8x512xf32> -> vector<72x512xf32>
    %cst_46 = arith.constant dense<0.000000e+00> : vector<8x512xf32>
    %151 = tpu.matmul %102, %150, %cst_46 {dimension_numbers = #tpu.dot_dimension_numbers<[1], [0], [0], [1], [0, 0, 1, 1], [], []>} : vector<8x72xf32>, vector<72x512xf32>, vector<8x512xf32> -> vector<8x512xf32>
    %c0_47 = arith.constant 0 : index
    %c0_48 = arith.constant 0 : index
    %152 = vector.load %arg5[%c0_47, %c0_48] : memref<8x1xf32, #tpu.memory_space<vmem>>, vector<8x1xf32>
    %c0_49 = arith.constant 0 : index
    %c0_50 = arith.constant 0 : index
    %153 = vector.load %arg6[%c0_49, %c0_50] : memref<8x1xf32, #tpu.memory_space<vmem>>, vector<8x1xf32>
    %cst_51 = arith.constant dense<0.000000e+00> : vector<8xf32>
    %154 = vector.multi_reduction <add>, %151, %cst_51 [1] : vector<8x512xf32> to vector<8xf32>
    %155 = vector.shape_cast %154 : vector<8xf32> to vector<8x1xf32>
    %156 = arith.mulf %151, %151 : vector<8x512xf32>
    %cst_52 = arith.constant dense<0.000000e+00> : vector<8xf32>
    %157 = vector.multi_reduction <add>, %156, %cst_52 [1] : vector<8x512xf32> to vector<8xf32>
    %158 = vector.shape_cast %157 : vector<8xf32> to vector<8x1xf32>
    %cst_53 = arith.constant 0.001953125 : f32
    %159 = vector.broadcast %cst_53 : f32 to vector<8x1xf32>
    %160 = arith.mulf %155, %159 : vector<8x1xf32>
    %cst_54 = arith.constant 0.001953125 : f32
    %161 = vector.broadcast %cst_54 : f32 to vector<8x1xf32>
    %162 = arith.mulf %158, %161 : vector<8x1xf32>
    %163 = arith.mulf %160, %160 : vector<8x1xf32>
    %164 = arith.subf %162, %163 : vector<8x1xf32>
    %cst_55 = arith.constant 0.000000e+00 : f32
    %165 = vector.broadcast %cst_55 : f32 to vector<8x1xf32>
    %166 = arith.maximumf %164, %165 : vector<8x1xf32>
    %cst_56 = arith.constant 9.99999974E-6 : f32
    %167 = vector.broadcast %cst_56 : f32 to vector<8x1xf32>
    %168 = arith.addf %166, %167 : vector<8x1xf32>
    %169 = math.rsqrt %168 : vector<8x1xf32>
    %170 = arith.mulf %152, %169 : vector<8x1xf32>
    %171 = arith.mulf %160, %170 : vector<8x1xf32>
    %172 = arith.subf %153, %171 : vector<8x1xf32>
    %173 = vector.broadcast %170 : vector<8x1xf32> to vector<8x512xf32>
    %174 = arith.mulf %151, %173 : vector<8x512xf32>
    %175 = vector.broadcast %172 : vector<8x1xf32> to vector<8x512xf32>
    %176 = arith.addf %174, %175 : vector<8x512xf32>
    %cst_57 = arith.constant 0.000000e+00 : f32
    %177 = vector.broadcast %cst_57 : f32 to vector<8x512xf32>
    %178 = arith.cmpf ogt, %176, %177 : vector<8x512xf32>
    %179 = math.exp %176 : vector<8x512xf32>
    %cst_58 = arith.constant 1.000000e+00 : f32
    %180 = vector.broadcast %cst_58 : f32 to vector<8x512xf32>
    %181 = arith.subf %179, %180 : vector<8x512xf32>
    %182 = arith.select %178, %176, %181 : vector<8x512xi1>, vector<8x512xf32>
    %c0_59 = arith.constant 0 : index
    %c0_60 = arith.constant 0 : index
    %183 = vector.load %arg7[%c0_59, %c0_60] : memref<8x72xf32, #tpu.memory_space<vmem>>, vector<8x72xf32>
    %cst_61 = arith.constant 0.000000e+00 : f32
    %184 = vector.broadcast %cst_61 : f32 to vector<8x128xf32>
    %185 = tpu.concatenate %184, %182, %184 in 1 : vector<8x128xf32>, vector<8x512xf32>, vector<8x128xf32> -> vector<8x768xf32>
    %186 = vector.extract_strided_slice %185 {offsets = [0, 111], sizes = [8, 512], strides = [1, 1]} : vector<8x768xf32> to vector<8x512xf32>
    %cst_62 = arith.constant 0.000000e+00 : f32
    %187 = vector.shape_cast %12 : vector<1x512xi1> to vector<1x512xi1>
    %188 = vector.broadcast %187 : vector<1x512xi1> to vector<8x512xi1>
    %189 = vector.broadcast %cst_62 : f32 to vector<8x512xf32>
    %190 = arith.select %188, %186, %189 : vector<8x512xi1>, vector<8x512xf32>
    %191 = vector.extract_strided_slice %185 {offsets = [0, 112], sizes = [8, 512], strides = [1, 1]} : vector<8x768xf32> to vector<8x512xf32>
    %cst_63 = arith.constant 0.000000e+00 : f32
    %192 = vector.shape_cast %23 : vector<1x512xi1> to vector<1x512xi1>
    %193 = vector.broadcast %192 : vector<1x512xi1> to vector<8x512xi1>
    %194 = vector.broadcast %cst_63 : f32 to vector<8x512xf32>
    %195 = arith.select %193, %191, %194 : vector<8x512xi1>, vector<8x512xf32>
    %196 = vector.extract_strided_slice %185 {offsets = [0, 113], sizes = [8, 512], strides = [1, 1]} : vector<8x768xf32> to vector<8x512xf32>
    %cst_64 = arith.constant 0.000000e+00 : f32
    %197 = vector.shape_cast %34 : vector<1x512xi1> to vector<1x512xi1>
    %198 = vector.broadcast %197 : vector<1x512xi1> to vector<8x512xi1>
    %199 = vector.broadcast %cst_64 : f32 to vector<8x512xf32>
    %200 = arith.select %198, %196, %199 : vector<8x512xi1>, vector<8x512xf32>
    %201 = vector.extract_strided_slice %185 {offsets = [0, 127], sizes = [8, 512], strides = [1, 1]} : vector<8x768xf32> to vector<8x512xf32>
    %cst_65 = arith.constant 0.000000e+00 : f32
    %202 = vector.shape_cast %45 : vector<1x512xi1> to vector<1x512xi1>
    %203 = vector.broadcast %202 : vector<1x512xi1> to vector<8x512xi1>
    %204 = vector.broadcast %cst_65 : f32 to vector<8x512xf32>
    %205 = arith.select %203, %201, %204 : vector<8x512xi1>, vector<8x512xf32>
    %206 = vector.extract_strided_slice %185 {offsets = [0, 128], sizes = [8, 512], strides = [1, 1]} : vector<8x768xf32> to vector<8x512xf32>
    %cst_66 = arith.constant 0.000000e+00 : f32
    %207 = vector.shape_cast %56 : vector<1x512xi1> to vector<1x512xi1>
    %208 = vector.broadcast %207 : vector<1x512xi1> to vector<8x512xi1>
    %209 = vector.broadcast %cst_66 : f32 to vector<8x512xf32>
    %210 = arith.select %208, %206, %209 : vector<8x512xi1>, vector<8x512xf32>
    %211 = vector.extract_strided_slice %185 {offsets = [0, 129], sizes = [8, 512], strides = [1, 1]} : vector<8x768xf32> to vector<8x512xf32>
    %cst_67 = arith.constant 0.000000e+00 : f32
    %212 = vector.shape_cast %67 : vector<1x512xi1> to vector<1x512xi1>
    %213 = vector.broadcast %212 : vector<1x512xi1> to vector<8x512xi1>
    %214 = vector.broadcast %cst_67 : f32 to vector<8x512xf32>
    %215 = arith.select %213, %211, %214 : vector<8x512xi1>, vector<8x512xf32>
    %216 = vector.extract_strided_slice %185 {offsets = [0, 143], sizes = [8, 512], strides = [1, 1]} : vector<8x768xf32> to vector<8x512xf32>
    %cst_68 = arith.constant 0.000000e+00 : f32
    %217 = vector.shape_cast %78 : vector<1x512xi1> to vector<1x512xi1>
    %218 = vector.broadcast %217 : vector<1x512xi1> to vector<8x512xi1>
    %219 = vector.broadcast %cst_68 : f32 to vector<8x512xf32>
    %220 = arith.select %218, %216, %219 : vector<8x512xi1>, vector<8x512xf32>
    %221 = vector.extract_strided_slice %185 {offsets = [0, 144], sizes = [8, 512], strides = [1, 1]} : vector<8x768xf32> to vector<8x512xf32>
    %cst_69 = arith.constant 0.000000e+00 : f32
    %222 = vector.shape_cast %89 : vector<1x512xi1> to vector<1x512xi1>
    %223 = vector.broadcast %222 : vector<1x512xi1> to vector<8x512xi1>
    %224 = vector.broadcast %cst_69 : f32 to vector<8x512xf32>
    %225 = arith.select %223, %221, %224 : vector<8x512xi1>, vector<8x512xf32>
    %226 = vector.extract_strided_slice %185 {offsets = [0, 145], sizes = [8, 512], strides = [1, 1]} : vector<8x768xf32> to vector<8x512xf32>
    %cst_70 = arith.constant 0.000000e+00 : f32
    %227 = vector.shape_cast %100 : vector<1x512xi1> to vector<1x512xi1>
    %228 = vector.broadcast %227 : vector<1x512xi1> to vector<8x512xi1>
    %229 = vector.broadcast %cst_70 : f32 to vector<8x512xf32>
    %230 = arith.select %228, %226, %229 : vector<8x512xi1>, vector<8x512xf32>
    %231 = tpu.concatenate %190, %195, %200, %205, %210, %215, %220, %225, %230 in 0 : vector<8x512xf32>, vector<8x512xf32>, vector<8x512xf32>, vector<8x512xf32>, vector<8x512xf32>, vector<8x512xf32>, vector<8x512xf32>, vector<8x512xf32>, vector<8x512xf32> -> vector<72x512xf32>
    %cst_71 = arith.constant dense<0.000000e+00> : vector<8x512xf32>
    %232 = tpu.matmul %183, %231, %cst_71 {dimension_numbers = #tpu.dot_dimension_numbers<[1], [0], [0], [1], [0, 0, 1, 1], [], []>} : vector<8x72xf32>, vector<72x512xf32>, vector<8x512xf32> -> vector<8x512xf32>
    %c0_72 = arith.constant 0 : index
    %c0_73 = arith.constant 0 : index
    %233 = vector.load %arg8[%c0_72, %c0_73] : memref<8x1xf32, #tpu.memory_space<vmem>>, vector<8x1xf32>
    %c0_74 = arith.constant 0 : index
    %c0_75 = arith.constant 0 : index
    %234 = vector.load %arg9[%c0_74, %c0_75] : memref<8x1xf32, #tpu.memory_space<vmem>>, vector<8x1xf32>
    %cst_76 = arith.constant dense<0.000000e+00> : vector<8xf32>
    %235 = vector.multi_reduction <add>, %232, %cst_76 [1] : vector<8x512xf32> to vector<8xf32>
    %236 = vector.shape_cast %235 : vector<8xf32> to vector<8x1xf32>
    %237 = arith.mulf %232, %232 : vector<8x512xf32>
    %cst_77 = arith.constant dense<0.000000e+00> : vector<8xf32>
    %238 = vector.multi_reduction <add>, %237, %cst_77 [1] : vector<8x512xf32> to vector<8xf32>
    %239 = vector.shape_cast %238 : vector<8xf32> to vector<8x1xf32>
    %cst_78 = arith.constant 0.001953125 : f32
    %240 = vector.broadcast %cst_78 : f32 to vector<8x1xf32>
    %241 = arith.mulf %236, %240 : vector<8x1xf32>
    %cst_79 = arith.constant 0.001953125 : f32
    %242 = vector.broadcast %cst_79 : f32 to vector<8x1xf32>
    %243 = arith.mulf %239, %242 : vector<8x1xf32>
    %244 = arith.mulf %241, %241 : vector<8x1xf32>
    %245 = arith.subf %243, %244 : vector<8x1xf32>
    %cst_80 = arith.constant 0.000000e+00 : f32
    %246 = vector.broadcast %cst_80 : f32 to vector<8x1xf32>
    %247 = arith.maximumf %245, %246 : vector<8x1xf32>
    %cst_81 = arith.constant 9.99999974E-6 : f32
    %248 = vector.broadcast %cst_81 : f32 to vector<8x1xf32>
    %249 = arith.addf %247, %248 : vector<8x1xf32>
    %250 = math.rsqrt %249 : vector<8x1xf32>
    %251 = arith.mulf %233, %250 : vector<8x1xf32>
    %252 = arith.mulf %241, %251 : vector<8x1xf32>
    %253 = arith.subf %234, %252 : vector<8x1xf32>
    %254 = vector.broadcast %251 : vector<8x1xf32> to vector<8x512xf32>
    %255 = arith.mulf %232, %254 : vector<8x512xf32>
    %256 = vector.broadcast %253 : vector<8x1xf32> to vector<8x512xf32>
    %257 = arith.addf %255, %256 : vector<8x512xf32>
    %cst_82 = arith.constant 0.000000e+00 : f32
    %258 = vector.broadcast %cst_82 : f32 to vector<8x512xf32>
    %259 = arith.cmpf ogt, %257, %258 : vector<8x512xf32>
    %260 = math.exp %257 : vector<8x512xf32>
    %cst_83 = arith.constant 1.000000e+00 : f32
    %261 = vector.broadcast %cst_83 : f32 to vector<8x512xf32>
    %262 = arith.subf %260, %261 : vector<8x512xf32>
    %263 = arith.select %259, %257, %262 : vector<8x512xi1>, vector<8x512xf32>
    %264 = arith.addf %263, %101 : vector<8x512xf32>
    %c0_84 = arith.constant 0 : index
    %c0_85 = arith.constant 0 : index
    %265 = vector.load %arg10[%c0_84, %c0_85] : memref<8x512xf32, #tpu.memory_space<vmem>>, vector<8x512xf32>
    tpu.vector_store %arg10[%c0_84, %c0_85], %264 {strides = array<i32>} : memref<8x512xf32, #tpu.memory_space<vmem>>, vector<8x512xf32>,
    return
  }
  func.func @transform_0(%arg0: i32) -> (i32, i32) {
    %c0_i32 = arith.constant 0 : i32
    %c0_i32_0 = arith.constant 0 : i32
    %c0_i32_1 = arith.constant 0 : i32
    return %c0_i32, %c0_i32_0 : i32, i32
  }
  func.func @transform_1(%arg0: i32) -> (i32, i32) {
    %c0_i32 = arith.constant 0 : i32
    %c0_i32_0 = arith.constant 0 : i32
    %c0_i32_1 = arith.constant 0 : i32
    return %c0_i32, %c0_i32_0 : i32, i32
  }
  func.func @transform_2(%arg0: i32) -> (i32, i32) {
    %c0_i32 = arith.constant 0 : i32
    %c0_i32_0 = arith.constant 0 : i32
    %c0_i32_1 = arith.constant 0 : i32
    return %c0_i32, %c0_i32_0 : i32, i32
  }
  func.func @transform_3(%arg0: i32) -> (i32, i32) {
    %c0_i32 = arith.constant 0 : i32
    %c0_i32_0 = arith.constant 0 : i32
    %c0_i32_1 = arith.constant 0 : i32
    return %c0_i32, %c0_i32_0 : i32, i32
  }
  func.func @transform_4(%arg0: i32) -> (i32, i32) {
    %c0_i32 = arith.constant 0 : i32
    %c0_i32_0 = arith.constant 0 : i32
    %c0_i32_1 = arith.constant 0 : i32
    return %c0_i32, %c0_i32_0 : i32, i32
  }
  func.func @transform_5(%arg0: i32) -> (i32, i32) {
    %c0_i32 = arith.constant 0 : i32
    %c0_i32_0 = arith.constant 0 : i32
    %c0_i32_1 = arith.constant 0 : i32
    return %c0_i32, %c0_i32_0 : i32, i32
  }
  func.func @transform_6(%arg0: i32) -> (i32, i32) {
    %c0_i32 = arith.constant 0 : i32
    %c0_i32_0 = arith.constant 0 : i32
    %c0_i32_1 = arith.constant 0 : i32
    return %c0_i32, %c0_i32_0 : i32, i32
  }
  func.func @transform_7(%arg0: i32) -> (i32, i32) {
    %c0_i32 = arith.constant 0 : i32
    %c0_i32_0 = arith.constant 0 : i32
    %c0_i32_1 = arith.constant 0 : i32
    return %c0_i32, %c0_i32_0 : i32, i32
  }
  func.func @transform_8(%arg0: i32) -> (i32, i32) {
    %c0_i32 = arith.constant 0 : i32
    %c0_i32_0 = arith.constant 0 : i32
    %c0_i32_1 = arith.constant 0 : i32
    return %c0_i32, %c0_i32_0 : i32, i32
  }
  func.func @transform_9(%arg0: i32) -> (i32, i32) {
    %c0_i32 = arith.constant 0 : i32
    %c0_i32_0 = arith.constant 0 : i32
    %c0_i32_1 = arith.constant 0 : i32
    return %c0_i32, %c0_i32_0 : i32, i32
  }
}

</mosaic_0001>

<llo_original>
// kernel: tpu_custom_call.1
$region0: #{tpu_custom_call.1}
  #allocation0 [shape = 'u32[]', space=smem, size = 0x4, offset = 0x4, fixed_abs, tag = 'smem constant byte address 0x4 - core index']
  #allocation1 [shape = 'u32[144,128]{1,0:T(1,128)}', space=vmem, size = 0x12000, scoped, tag = 'internal scratch']
  %s0 = inlined_call_operand.vmem [shape: f32[8,512], index: 0, kind: input, shape index: {}]
  %s1 = inlined_call_operand.hbm [shape: s32[1,512], index: 1, kind: input, shape index: {}]
  %s2 = inlined_call_operand.hbm [shape: s32[1,512], index: 2, kind: input, shape index: {}]
  %s3 = inlined_call_operand.vmem [shape: f32[8,72], index: 3, kind: input, shape index: {}]
  %s4 = inlined_call_operand.vmem [shape: f32[8,1], index: 4, kind: input, shape index: {}]
  %s5 = inlined_call_operand.vmem [shape: f32[8,1], index: 5, kind: input, shape index: {}]
  %s6 = inlined_call_operand.vmem [shape: f32[8,72], index: 6, kind: input, shape index: {}]
  %s7 = inlined_call_operand.vmem [shape: f32[8,1], index: 7, kind: input, shape index: {}]
  %s8 = inlined_call_operand.vmem [shape: f32[8,1], index: 8, kind: input, shape index: {}]
  %s9 = inlined_call_operand.hbm [shape: f32[8,512], index: 9, kind: output, shape index: {}]
  %s10 = sld [smem:[#allocation0]]
  $region54: #{tpu_custom_call.1} parent=0
    _
  %s12 = ssub.s32 1, %s10
  %s13 = scalar_select 0, %s12, %s10
  $region1: #{tpu_custom_call.1} parent=0
    #allocation2 [shape = 'u8[2048]{0}', space=vmem, size = 0x800, scoped, tag = 'input window, operand 1, single buffered']
    #allocation3 [shape = 's32[1]{0}', space=sflag, size = 0x4, scoped, tag = 'scoped memory for tpu_custom_call.1']
    #allocation4 [shape = 's32[1]{0}', space=sflag, size = 0x4, scoped, tag = 'scoped memory for tpu_custom_call.1']
    #allocation5 [shape = 'u8[2048]{0}', space=vmem, size = 0x800, scoped, tag = 'input window, operand 2, single buffered']
    #allocation6 [shape = 's32[1]{0}', space=sflag, size = 0x4, scoped, tag = 'scoped memory for tpu_custom_call.1']
    #allocation7 [shape = 'u8[16384]{0}', space=vmem, size = 0x4000, scoped, tag = 'output window, operand 0, single buffered']
    %14 = vsyncpa [#allocation3], 0
    %15 = vsyncpa [#allocation6], 0
    %16 = vsyncpa [#allocation4], 0
    // Predicated region
    $region2: #{tpu_custom_call.1} parent=1 // pred_check
      _
    $region3: #{tpu_custom_call.1} parent=1 // pred_check_branch
      %18 = sbr.rel (0) target = $region5
    $region4: #{tpu_custom_call.1} parent=1 // pred_region
      _
    $region5: #{tpu_custom_call.1} parent=1 // pred_fallthru
      _
    // Predicated region
    $region6: #{tpu_custom_call.1} parent=1 // pred_check
      _
    $region7: #{tpu_custom_call.1} parent=1 // pred_check_branch
      %20 = sbr.rel (0) target = $region9
    $region8: #{tpu_custom_call.1} parent=1 // pred_region
      %s22 = ssub.s32 64, 64
      %23 = vsyncadd [#allocation3], %s22
      %s25 = sshll.u32 [#allocation2], 4
      %s26 = int_to_ptr.vmem [resolvable:$true] %s25
      %28 = dma.hbm_to_vmem [thread:$0]  %s1, 64, %s26, [#allocation3]
    $region9: #{tpu_custom_call.1} parent=1 // pred_fallthru
      _
    // Predicated region
    $region10: #{tpu_custom_call.1} parent=1 // pred_check
      _
    $region11: #{tpu_custom_call.1} parent=1 // pred_check_branch
      %30 = sbr.rel (0) target = $region13
    $region12: #{tpu_custom_call.1} parent=1 // pred_region
      %s32 = ssub.s32 64, 64
      %33 = vsyncadd [#allocation6], %s32
      %s35 = sshll.u32 [#allocation5], 4
      %s36 = int_to_ptr.vmem [resolvable:$true] %s35
      %38 = dma.hbm_to_vmem [thread:$0]  %s2, 64, %s36, [#allocation6]
    $region13: #{tpu_custom_call.1} parent=1 // pred_fallthru
      _
    // Predicated region
    $region14: #{tpu_custom_call.1} parent=1 // pred_check
      _
    $region15: #{tpu_custom_call.1} parent=1 // pred_check_branch
      %40 = sbr.rel (0) target = $region17
    $region16: #{tpu_custom_call.1} parent=1 // pred_region
      _
    $region17: #{tpu_custom_call.1} parent=1 // pred_fallthru
      _
    // Predicated region
    $region18: #{tpu_custom_call.1} parent=1 // pred_check
      _
    $region19: #{tpu_custom_call.1} parent=1 // pred_check_branch
      %42 = sbr.rel (0) target = $region21
    $region20: #{tpu_custom_call.1} parent=1 // pred_region
      _
    $region21: #{tpu_custom_call.1} parent=1 // pred_fallthru
      _
    // Predicated region
    $region22: #{tpu_custom_call.1} parent=1 // pred_check
      _
    $region23: #{tpu_custom_call.1} parent=1 // pred_check_branch
      %44 = sbr.rel (0) target = $region25
    $region24: #{tpu_custom_call.1} parent=1 // pred_region
      _
    $region25: #{tpu_custom_call.1} parent=1 // pred_fallthru
      _
    // Predicated region
    $region26: #{tpu_custom_call.1} parent=1 // pred_check
      _
    $region27: #{tpu_custom_call.1} parent=1 // pred_check_branch
      %46 = sbr.rel (0) target = $region29
    $region28: #{tpu_custom_call.1} parent=1 // pred_region
      _
    $region29: #{tpu_custom_call.1} parent=1 // pred_fallthru
      _
    // Predicated region
    $region30: #{tpu_custom_call.1} parent=1 // pred_check
      _
    $region31: #{tpu_custom_call.1} parent=1 // pred_check_branch
      %48 = sbr.rel (0) target = $region33
    $region32: #{tpu_custom_call.1} parent=1 // pred_region
      _
    $region33: #{tpu_custom_call.1} parent=1 // pred_fallthru
      _
    // Predicated region
    $region34: #{tpu_custom_call.1} parent=1 // pred_check
      _
    $region35: #{tpu_custom_call.1} parent=1 // pred_check_branch
      %50 = sbr.rel (0) target = $region37
    $region36: #{tpu_custom_call.1} parent=1 // pred_region
      _
    $region37: #{tpu_custom_call.1} parent=1 // pred_fallthru
      _
    // Predicated region
    $region38: #{tpu_custom_call.1} parent=1 // pred_check
      _
    $region39: #{tpu_custom_call.1} parent=1 // pred_check_branch
      %52 = sbr.rel (0) target = $region41
    $region40: #{tpu_custom_call.1} parent=1 // pred_region
      %53 = dma.done [#allocation3], 64
    $region41: #{tpu_custom_call.1} parent=1 // pred_fallthru
      _
    // Predicated region
    $region42: #{tpu_custom_call.1} parent=1 // pred_check
      _
    $region43: #{tpu_custom_call.1} parent=1 // pred_check_branch
      %55 = sbr.rel (0) target = $region45
    $region44: #{tpu_custom_call.1} parent=1 // pred_region
      %56 = dma.done [#allocation6], 64
    $region45: #{tpu_custom_call.1} parent=1 // pred_fallthru
      _
    %v57 = vld [vmem:[#allocation2] sm:$0xf]
    %v58 = vld [vmem:[#allocation5] sm:$0xf]
    %vm59 = vcmp.ge.s32.totalorder %v57, 1
    %vm60 = vcmp.lt.s32.totalorder %v57, 17
    %vm61 = vmand %vm59, %vm60
    %vm62 = vcmp.ge.s32.totalorder %v58, 1
    %vm63 = vmand %vm61, %vm62
    %vm64 = vcmp.lt.s32.totalorder %v58, 17
    %vm65 = vmand %vm63, %vm64
    %vm66 = vcmp.ge.s32.totalorder %v58, 0
    %vm67 = vmand %vm61, %vm66
    %vm68 = vcmp.lt.s32.totalorder %v58, 16
    %vm69 = vmand %vm67, %vm68
    %vm70 = vcmp.ge.s32.totalorder %v58, 4294967295
    %vm71 = vmand %vm61, %vm70
    %vm72 = vcmp.lt.s32.totalorder %v58, 15
    %vm73 = vmand %vm71, %vm72
    %vm74 = vcmp.ge.s32.totalorder %v57, 0
    %vm75 = vcmp.lt.s32.totalorder %v57, 16
    %vm76 = vmand %vm74, %vm75
    %vm77 = vmand %vm76, %vm62
    %vm78 = vmand %vm77, %vm64
    %vm79 = vmand %vm76, %vm66
    %vm80 = vmand %vm79, %vm68
    %vm81 = vmand %vm76, %vm70
    %vm82 = vmand %vm81, %vm72
    %vm83 = vcmp.ge.s32.totalorder %v57, 4294967295
    %vm84 = vcmp.lt.s32.totalorder %v57, 15
    %vm85 = vmand %vm83, %vm84
    %vm86 = vmand %vm85, %vm62
    %vm87 = vmand %vm86, %vm64
    %vm88 = vmand %vm85, %vm66
    %vm89 = vmand %vm88, %vm68
    %vm90 = vmand %vm85, %vm70
    %vm91 = vmand %vm90, %vm72
    %v92 = vld [vmem:[%s0] sm:$0xff]
    %v93 = vld [vmem:[%s0 + $0x8] sm:$0xff]
    %v94 = vld [vmem:[%s0 + $0x10] sm:$0xff]
    %v95 = vld [vmem:[%s0 + $0x18] sm:$0xff]
    %v96 = vld [vmem:[%s3] sm:$0xff]
    %v97 = vsel %vm65, 1, 0
    %v98 = vlaneseq
    %v99 = vshrl.u32 %v98, 7
    %v100 = vsub.s32 0, %v99
    %v101 = vrot.slane %v97, %v100
    %v102 = vlaneseq
    %v103 = vshrl.u32 %v102, 7
    %v104 = vsub.s32 1, %v103
    %v105 = vrot.slane %v97, %v104
    %v106 = vlaneseq
    %v107 = vshrl.u32 %v106, 7
    %v108 = vsub.s32 2, %v107
    %v109 = vrot.slane %v97, %v108
    %v110 = vlaneseq
    %v111 = vshrl.u32 %v110, 7
    %v112 = vsub.s32 3, %v111
    %v113 = vrot.slane %v97, %v112
    %vm114 = vcmp.eq.s32.totalorder %v101, 1
    %vm115 = vcmp.eq.s32.totalorder %v105, 1
    %vm116 = vcmp.eq.s32.totalorder %v109, 1
    %vm117 = vcmp.eq.s32.totalorder %v113, 1
    %123 = vrot.lane.b32.xlu0 0.0, 17
    %v124 = vpop.permute.xlu0 %123
    %125 = vrot.lane.b32.xlu0 %v92, 17
    %v126 = vpop.permute.xlu0 %125
    %127 = vrot.lane.b32.xlu0 %v93, 17
    %v128 = vpop.permute.xlu0 %127
    %129 = vrot.lane.b32.xlu0 %v94, 17
    %v130 = vpop.permute.xlu0 %129
    %131 = vrot.lane.b32.xlu0 %v95, 17
    %v132 = vpop.permute.xlu0 %131
    %vm133 = vcmask 138240
    %v134 = vsel %vm133, %v124, %v126
    %v135 = vsel %vm133, %v126, %v128
    %v136 = vsel %vm133, %v128, %v130
    %v137 = vsel %vm133, %v130, %v132
    %v142 = vsel %vm114, %v134, 0.0
    %v143 = vsel %vm115, %v135, 0.0
    %v144 = vsel %vm116, %v136, 0.0
    %v145 = vsel %vm117, %v137, 0.0
    %v146 = vsel %vm69, 1, 0
    %v147 = vlaneseq
    %v148 = vshrl.u32 %v147, 7
    %v149 = vsub.s32 0, %v148
    %v150 = vrot.slane %v146, %v149
    %v151 = vlaneseq
    %v152 = vshrl.u32 %v151, 7
    %v153 = vsub.s32 1, %v152
    %v154 = vrot.slane %v146, %v153
    %v155 = vlaneseq
    %v156 = vshrl.u32 %v155, 7
    %v157 = vsub.s32 2, %v156
    %v158 = vrot.slane %v146, %v157
    %v159 = vlaneseq
    %v160 = vshrl.u32 %v159, 7
    %v161 = vsub.s32 3, %v160
    %v162 = vrot.slane %v146, %v161
    %vm163 = vcmp.eq.s32.totalorder %v150, 1
    %vm164 = vcmp.eq.s32.totalorder %v154, 1
    %vm165 = vcmp.eq.s32.totalorder %v158, 1
    %vm166 = vcmp.eq.s32.totalorder %v162, 1
    %167 = vrot.lane.b32.xlu0 0.0, 16
    %v168 = vpop.permute.xlu0 %167
    %169 = vrot.lane.b32.xlu0 %v92, 16
    %v170 = vpop.permute.xlu0 %169
    %171 = vrot.lane.b32.xlu0 %v93, 16
    %v172 = vpop.permute.xlu0 %171
    %173 = vrot.lane.b32.xlu0 %v94, 16
    %v174 = vpop.permute.xlu0 %173
    %175 = vrot.lane.b32.xlu0 %v95, 16
    %v176 = vpop.permute.xlu0 %175
    %vm177 = vcmask 130048
    %v178 = vsel %vm177, %v168, %v170
    %v179 = vsel %vm177, %v170, %v172
    %v180 = vsel %vm177, %v172, %v174
    %v181 = vsel %vm177, %v174, %v176
    %v186 = vsel %vm163, %v178, 0.0
    %v187 = vsel %vm164, %v179, 0.0
    %v188 = vsel %vm165, %v180, 0.0
    %v189 = vsel %vm166, %v181, 0.0
    %v190 = vsel %vm73, 1, 0
    %v191 = vlaneseq
    %v192 = vshrl.u32 %v191, 7
    %v193 = vsub.s32 0, %v192
    %v194 = vrot.slane %v190, %v193
    %v195 = vlaneseq
    %v196 = vshrl.u32 %v195, 7
    %v197 = vsub.s32 1, %v196
    %v198 = vrot.slane %v190, %v197
    %v199 = vlaneseq
    %v200 = vshrl.u32 %v199, 7
    %v201 = vsub.s32 2, %v200
    %v202 = vrot.slane %v190, %v201
    %v203 = vlaneseq
    %v204 = vshrl.u32 %v203, 7
    %v205 = vsub.s32 3, %v204
    %v206 = vrot.slane %v190, %v205
    %vm207 = vcmp.eq.s32.totalorder %v194, 1
    %vm208 = vcmp.eq.s32.totalorder %v198, 1
    %vm209 = vcmp.eq.s32.totalorder %v202, 1
    %vm210 = vcmp.eq.s32.totalorder %v206, 1
    %211 = vrot.lane.b32.xlu0 0.0, 15
    %v212 = vpop.permute.xlu0 %211
    %213 = vrot.lane.b32.xlu0 %v92, 15
    %v214 = vpop.permute.xlu0 %213
    %215 = vrot.lane.b32.xlu0 %v93, 15
    %v216 = vpop.permute.xlu0 %215
    %217 = vrot.lane.b32.xlu0 %v94, 15
    %v218 = vpop.permute.xlu0 %217
    %219 = vrot.lane.b32.xlu0 %v95, 15
    %v220 = vpop.permute.xlu0 %219
    %vm221 = vcmask 121856
    %v222 = vsel %vm221, %v212, %v214
    %v223 = vsel %vm221, %v214, %v216
    %v224 = vsel %vm221, %v216, %v218
    %v225 = vsel %vm221, %v218, %v220
    %v230 = vsel %vm207, %v222, 0.0
    %v231 = vsel %vm208, %v223, 0.0
    %v232 = vsel %vm209, %v224, 0.0
    %v233 = vsel %vm210, %v225, 0.0
    %v234 = vsel %vm78, 1, 0
    %v235 = vlaneseq
    %v236 = vshrl.u32 %v235, 7
    %v237 = vsub.s32 0, %v236
    %v238 = vrot.slane %v234, %v237
    %v239 = vlaneseq
    %v240 = vshrl.u32 %v239, 7
    %v241 = vsub.s32 1, %v240
    %v242 = vrot.slane %v234, %v241
    %v243 = vlaneseq
    %v244 = vshrl.u32 %v243, 7
    %v245 = vsub.s32 2, %v244
    %v246 = vrot.slane %v234, %v245
    %v247 = vlaneseq
    %v248 = vshrl.u32 %v247, 7
    %v249 = vsub.s32 3, %v248
    %v250 = vrot.slane %v234, %v249
    %vm251 = vcmp.eq.s32.totalorder %v238, 1
    %vm252 = vcmp.eq.s32.totalorder %v242, 1
    %vm253 = vcmp.eq.s32.totalorder %v246, 1
    %vm254 = vcmp.eq.s32.totalorder %v250, 1
    %255 = vrot.lane.b32.xlu0 0.0, 1
    %v256 = vpop.permute.xlu0 %255
    %257 = vrot.lane.b32.xlu0 %v92, 1
    %v258 = vpop.permute.xlu0 %257
    %259 = vrot.lane.b32.xlu0 %v93, 1
    %v260 = vpop.permute.xlu0 %259
    %261 = vrot.lane.b32.xlu0 %v94, 1
    %v262 = vpop.permute.xlu0 %261
    %263 = vrot.lane.b32.xlu0 %v95, 1
    %v264 = vpop.permute.xlu0 %263
    %vm265 = vcmask 7168
    %v266 = vsel %vm265, %v256, %v258
    %v267 = vsel %vm265, %v258, %v260
    %v268 = vsel %vm265, %v260, %v262
    %v269 = vsel %vm265, %v262, %v264
    %v274 = vsel %vm251, %v266, 0.0
    %v275 = vsel %vm252, %v267, 0.0
    %v276 = vsel %vm253, %v268, 0.0
    %v277 = vsel %vm254, %v269, 0.0
    %v278 = vsel %vm80, 1, 0
    %v279 = vlaneseq
    %v280 = vshrl.u32 %v279, 7
    %v281 = vsub.s32 0, %v280
    %v282 = vrot.slane %v278, %v281
    %v283 = vlaneseq
    %v284 = vshrl.u32 %v283, 7
    %v285 = vsub.s32 1, %v284
    %v286 = vrot.slane %v278, %v285
    %v287 = vlaneseq
    %v288 = vshrl.u32 %v287, 7
    %v289 = vsub.s32 2, %v288
    %v290 = vrot.slane %v278, %v289
    %v291 = vlaneseq
    %v292 = vshrl.u32 %v291, 7
    %v293 = vsub.s32 3, %v292
    %v294 = vrot.slane %v278, %v293
    %vm295 = vcmp.eq.s32.totalorder %v282, 1
    %vm296 = vcmp.eq.s32.totalorder %v286, 1
    %vm297 = vcmp.eq.s32.totalorder %v290, 1
    %vm298 = vcmp.eq.s32.totalorder %v294, 1
    %v299 = vsel %vm295, %v92, 0.0
    %v300 = vsel %vm296, %v93, 0.0
    %v301 = vsel %vm297, %v94, 0.0
    %v302 = vsel %vm298, %v95, 0.0
    %v303 = vsel %vm82, 1, 0
    %v304 = vlaneseq
    %v305 = vshrl.u32 %v304, 7
    %v306 = vsub.s32 0, %v305
    %v307 = vrot.slane %v303, %v306
    %v308 = vlaneseq
    %v309 = vshrl.u32 %v308, 7
    %v310 = vsub.s32 1, %v309
    %v311 = vrot.slane %v303, %v310
    %v312 = vlaneseq
    %v313 = vshrl.u32 %v312, 7
    %v314 = vsub.s32 2, %v313
    %v315 = vrot.slane %v303, %v314
    %v316 = vlaneseq
    %v317 = vshrl.u32 %v316, 7
    %v318 = vsub.s32 3, %v317
    %v319 = vrot.slane %v303, %v318
    %vm320 = vcmp.eq.s32.totalorder %v307, 1
    %vm321 = vcmp.eq.s32.totalorder %v311, 1
    %vm322 = vcmp.eq.s32.totalorder %v315, 1
    %vm323 = vcmp.eq.s32.totalorder %v319, 1
    %324 = vrot.lane.b32.xlu0 %v92, 127
    %v325 = vpop.permute.xlu0 %324
    %326 = vrot.lane.b32.xlu0 %v93, 127
    %v327 = vpop.permute.xlu0 %326
    %328 = vrot.lane.b32.xlu0 %v94, 127
    %v329 = vpop.permute.xlu0 %328
    %330 = vrot.lane.b32.xlu0 %v95, 127
    %v331 = vpop.permute.xlu0 %330
    %332 = vrot.lane.b32.xlu0 0.0, 127
    %v333 = vpop.permute.xlu0 %332
    %vm334 = vcmask 1039360
    %v335 = vsel %vm334, %v325, %v327
    %v336 = vsel %vm334, %v327, %v329
    %v337 = vsel %vm334, %v329, %v331
    %v338 = vsel %vm334, %v331, %v333
    %v343 = vsel %vm320, %v335, 0.0
    %v344 = vsel %vm321, %v336, 0.0
    %v345 = vsel %vm322, %v337, 0.0
    %v346 = vsel %vm323, %v338, 0.0
    %v347 = vsel %vm87, 1, 0
    %v348 = vlaneseq
    %v349 = vshrl.u32 %v348, 7
    %v350 = vsub.s32 0, %v349
    %v351 = vrot.slane %v347, %v350
    %v352 = vlaneseq
    %v353 = vshrl.u32 %v352, 7
    %v354 = vsub.s32 1, %v353
    %v355 = vrot.slane %v347, %v354
    %v356 = vlaneseq
    %v357 = vshrl.u32 %v356, 7
    %v358 = vsub.s32 2, %v357
    %v359 = vrot.slane %v347, %v358
    %v360 = vlaneseq
    %v361 = vshrl.u32 %v360, 7
    %v362 = vsub.s32 3, %v361
    %v363 = vrot.slane %v347, %v362
    %vm364 = vcmp.eq.s32.totalorder %v351, 1
    %vm365 = vcmp.eq.s32.totalorder %v355, 1
    %vm366 = vcmp.eq.s32.totalorder %v359, 1
    %vm367 = vcmp.eq.s32.totalorder %v363, 1
    %368 = vrot.lane.b32.xlu0 %v92, 113
    %v369 = vpop.permute.xlu0 %368
    %370 = vrot.lane.b32.xlu0 %v93, 113
    %v371 = vpop.permute.xlu0 %370
    %372 = vrot.lane.b32.xlu0 %v94, 113
    %v373 = vpop.permute.xlu0 %372
    %374 = vrot.lane.b32.xlu0 %v95, 113
    %v375 = vpop.permute.xlu0 %374
    %376 = vrot.lane.b32.xlu0 0.0, 113
    %v377 = vpop.permute.xlu0 %376
    %vm378 = vcmask 924672
    %v379 = vsel %vm378, %v369, %v371
    %v380 = vsel %vm378, %v371, %v373
    %v381 = vsel %vm378, %v373, %v375
    %v382 = vsel %vm378, %v375, %v377
    %v387 = vsel %vm364, %v379, 0.0
    %v388 = vsel %vm365, %v380, 0.0
    %v389 = vsel %vm366, %v381, 0.0
    %v390 = vsel %vm367, %v382, 0.0
    %v391 = vsel %vm89, 1, 0
    %v392 = vlaneseq
    %v393 = vshrl.u32 %v392, 7
    %v394 = vsub.s32 0, %v393
    %v395 = vrot.slane %v391, %v394
    %v396 = vlaneseq
    %v397 = vshrl.u32 %v396, 7
    %v398 = vsub.s32 1, %v397
    %v399 = vrot.slane %v391, %v398
    %v400 = vlaneseq
    %v401 = vshrl.u32 %v400, 7
    %v402 = vsub.s32 2, %v401
    %v403 = vrot.slane %v391, %v402
    %v404 = vlaneseq
    %v405 = vshrl.u32 %v404, 7
    %v406 = vsub.s32 3, %v405
    %v407 = vrot.slane %v391, %v406
    %vm408 = vcmp.eq.s32.totalorder %v395, 1
    %vm409 = vcmp.eq.s32.totalorder %v399, 1
    %vm410 = vcmp.eq.s32.totalorder %v403, 1
    %vm411 = vcmp.eq.s32.totalorder %v407, 1
    %412 = vrot.lane.b32.xlu0 %v92, 112
    %v413 = vpop.permute.xlu0 %412
    %414 = vrot.lane.b32.xlu0 %v93, 112
    %v415 = vpop.permute.xlu0 %414
    %416 = vrot.lane.b32.xlu0 %v94, 112
    %v417 = vpop.permute.xlu0 %416
    %418 = vrot.lane.b32.xlu0 %v95, 112
    %v419 = vpop.permute.xlu0 %418
    %420 = vrot.lane.b32.xlu0 0.0, 112
    %v421 = vpop.permute.xlu0 %420
    %vm422 = vcmask 916480
    %v423 = vsel %vm422, %v413, %v415
    %v424 = vsel %vm422, %v415, %v417
    %v425 = vsel %vm422, %v417, %v419
    %v426 = vsel %vm422, %v419, %v421
    %v431 = vsel %vm408, %v423, 0.0
    %v432 = vsel %vm409, %v424, 0.0
    %v433 = vsel %vm410, %v425, 0.0
    %v434 = vsel %vm411, %v426, 0.0
    %v435 = vsel %vm91, 1, 0
    %v436 = vlaneseq
    %v437 = vshrl.u32 %v436, 7
    %v438 = vsub.s32 0, %v437
    %v439 = vrot.slane %v435, %v438
    %v440 = vlaneseq
    %v441 = vshrl.u32 %v440, 7
    %v442 = vsub.s32 1, %v441
    %v443 = vrot.slane %v435, %v442
    %v444 = vlaneseq
    %v445 = vshrl.u32 %v444, 7
    %v446 = vsub.s32 2, %v445
    %v447 = vrot.slane %v435, %v446
    %v448 = vlaneseq
    %v449 = vshrl.u32 %v448, 7
    %v450 = vsub.s32 3, %v449
    %v451 = vrot.slane %v435, %v450
    %vm452 = vcmp.eq.s32.totalorder %v439, 1
    %vm453 = vcmp.eq.s32.totalorder %v443, 1
    %vm454 = vcmp.eq.s32.totalorder %v447, 1
    %vm455 = vcmp.eq.s32.totalorder %v451, 1
    %456 = vrot.lane.b32.xlu0 %v92, 111
    %v457 = vpop.permute.xlu0 %456
    %458 = vrot.lane.b32.xlu0 %v93, 111
    %v459 = vpop.permute.xlu0 %458
    %460 = vrot.lane.b32.xlu0 %v94, 111
    %v461 = vpop.permute.xlu0 %460
    %462 = vrot.lane.b32.xlu0 %v95, 111
    %v463 = vpop.permute.xlu0 %462
    %464 = vrot.lane.b32.xlu0 0.0, 111
    %v465 = vpop.permute.xlu0 %464
    %vm466 = vcmask 908288
    %v467 = vsel %vm466, %v457, %v459
    %v468 = vsel %vm466, %v459, %v461
    %v469 = vsel %vm466, %v461, %v463
    %v470 = vsel %vm466, %v463, %v465
    %v475 = vsel %vm452, %v467, 0.0
    %v476 = vsel %vm453, %v468, 0.0
    %v477 = vsel %vm454, %v469, 0.0
    %v478 = vsel %vm455, %v470, 0.0
    %vm479 = vcmask 588800
    %v481 = vsel %vm479, %v96, 0
    %483 = vmatprep.subr.mxu0 %v143
    %484 = vmatpush1.msra.mxu0 %v142
    %485 = vmatprep.subr.mxu0 %v187
    %486 = vmatpush1.msra.mxu0 %v186
    %487 = vmatprep.subr.mxu0 %v231
    %488 = vmatpush1.msra.mxu0 %v230
    %489 = vmatprep.subr.mxu0 %v275
    %490 = vmatpush1.msra.mxu0 %v274
    %491 = vmatprep.subr.mxu0 %v300
    %492 = vmatpush1.msra.mxu0 %v299
    %493 = vmatprep.subr.mxu0 %v344
    %494 = vmatpush1.msra.mxu0 %v343
    %495 = vmatprep.subr.mxu0 %v388
    %496 = vmatpush1.msra.mxu0 %v387
    %497 = vmatprep.subr.mxu0 %v432
    %498 = vmatpush1.msra.mxu0 %v431
    %499 = vmatprep.subr.mxu0 %v476
    %500 = vmatpush1.msra.mxu0 %v475
    %501 = vmatprep.subr.mxu0 0.0
    %502 = vmatpush1.msra.mxu0 0.0
    %503 = vmatprep.subr.mxu0 0.0
    %504 = vmatpush1.msra.mxu0 0.0
    %505 = vmatprep.subr.mxu0 0.0
    %506 = vmatpush1.msra.mxu0 0.0
    %507 = vmatprep.subr.mxu0 0.0
    %508 = vmatpush1.msra.mxu0 0.0
    %509 = vmatprep.subr.mxu0 0.0
    %510 = vmatpush1.msra.mxu0 0.0
    %511 = vmatprep.subr.mxu0 0.0
    %512 = vmatpush1.msra.mxu0 0.0
    %513 = vmatprep.subr.mxu0 0.0
    %514 = vmatpush1.msra.mxu0 0.0
    %515 = vmatprep.subr.mxu0 0.0
    %516 = vmatpush1.msra.mxu0 0.0
    %517 = vmatprep.subr.mxu0 0.0
    %518 = vmatpush1.msra.mxu0 0.0
    %519 = vmatprep.subr.mxu0 0.0
    %520 = vmatpush1.msra.mxu0 0.0
    %521 = vmatprep.subr.mxu0 0.0
    %522 = vmatpush1.msra.mxu0 0.0
    %523 = vmatprep.subr.mxu0 0.0
    %524 = vmatpush1.msra.mxu0 0.0
    %525 = vmatprep.subr.mxu0 0.0
    %526 = vmatpush1.msra.mxu0 0.0
    %527 = vmatprep.subr.mxu0 0.0
    %528 = vmatpush1.msra.mxu0 0.0
    %529 = vmatprep.subr.mxu0 0.0
    %530 = vmatpush1.msra.mxu0 0.0
    %531 = vmatprep.subr.mxu0 0.0
    %532 = vmatpush1.msra.mxu0 0.0
    %533 = vmatprep.subr.mxu0 0.0
    %534 = vmatpush1.msra.mxu0 0.0
    %535 = vmatprep.subr.mxu0 0.0
    %536 = vmatpush1.msra.mxu0 0.0
    %537 = vmatprep.subr.mxu0 0.0
    %538 = vmatpush1.msra.mxu0 0.0
    %539 = vmatprep.subr.mxu0 0.0
    %540 = vmatpush1.msra.mxu0 0.0
    %541 = vmatprep.subr.mxu0 0.0
    %542 = vmatpush1.msra.mxu0 0.0
    %543 = vmatprep.subr.mxu0 0.0
    %544 = vmatpush1.msra.mxu0 0.0
    %545 = vmatprep.subr.mxu0 0.0
    %546 = vmatpush1.msra.mxu0 0.0
    %547 = vmatprep.mubr.f32.mxu0 0.0
    %548 = vmatmul.mubr.f32.gmra.mrb[0].mxu0 %v481
    %v549 = vpop.f32.mrb[0].mxu0
    %v550 = vadd.f32 0.0, %v549
    %v551 = vpop.f32.mrb[0].mxu0
    %v552 = vadd.f32 0.0, %v551
    %553 = vdwg.mxu0
    %554 = vmatprep.subr.mxu0 %v145
    %555 = vmatpush1.msra.mxu0 %v144
    %556 = vmatprep.subr.mxu0 %v189
    %557 = vmatpush1.msra.mxu0 %v188
    %558 = vmatprep.subr.mxu0 %v233
    %559 = vmatpush1.msra.mxu0 %v232
    %560 = vmatprep.subr.mxu0 %v277
    %561 = vmatpush1.msra.mxu0 %v276
    %562 = vmatprep.subr.mxu0 %v302
    %563 = vmatpush1.msra.mxu0 %v301
    %564 = vmatprep.subr.mxu0 %v346
    %565 = vmatpush1.msra.mxu0 %v345
    %566 = vmatprep.subr.mxu0 %v390
    %567 = vmatpush1.msra.mxu0 %v389
    %568 = vmatprep.subr.mxu0 %v434
    %569 = vmatpush1.msra.mxu0 %v433
    %570 = vmatprep.subr.mxu0 %v478
    %571 = vmatpush1.msra.mxu0 %v477
    %572 = vmatprep.subr.mxu0 0.0
    %573 = vmatpush1.msra.mxu0 0.0
    %574 = vmatprep.subr.mxu0 0.0
    %575 = vmatpush1.msra.mxu0 0.0
    %576 = vmatprep.subr.mxu0 0.0
    %577 = vmatpush1.msra.mxu0 0.0
    %578 = vmatprep.subr.mxu0 0.0
    %579 = vmatpush1.msra.mxu0 0.0
    %580 = vmatprep.subr.mxu0 0.0
    %581 = vmatpush1.msra.mxu0 0.0
    %582 = vmatprep.subr.mxu0 0.0
    %583 = vmatpush1.msra.mxu0 0.0
    %584 = vmatprep.subr.mxu0 0.0
    %585 = vmatpush1.msra.mxu0 0.0
    %586 = vmatprep.subr.mxu0 0.0
    %587 = vmatpush1.msra.mxu0 0.0
    %588 = vmatprep.subr.mxu0 0.0
    %589 = vmatpush1.msra.mxu0 0.0
    %590 = vmatprep.subr.mxu0 0.0
    %591 = vmatpush1.msra.mxu0 0.0
    %592 = vmatprep.subr.mxu0 0.0
    %593 = vmatpush1.msra.mxu0 0.0
    %594 = vmatprep.subr.mxu0 0.0
    %595 = vmatpush1.msra.mxu0 0.0
    %596 = vmatprep.subr.mxu0 0.0
    %597 = vmatpush1.msra.mxu0 0.0
    %598 = vmatprep.subr.mxu0 0.0
    %599 = vmatpush1.msra.mxu0 0.0
    %600 = vmatprep.subr.mxu0 0.0
    %601 = vmatpush1.msra.mxu0 0.0
    %602 = vmatprep.subr.mxu0 0.0
    %603 = vmatpush1.msra.mxu0 0.0
    %604 = vmatprep.subr.mxu0 0.0
    %605 = vmatpush1.msra.mxu0 0.0
    %606 = vmatprep.subr.mxu0 0.0
    %607 = vmatpush1.msra.mxu0 0.0
    %608 = vmatprep.subr.mxu0 0.0
    %609 = vmatpush1.msra.mxu0 0.0
    %610 = vmatprep.subr.mxu0 0.0
    %611 = vmatpush1.msra.mxu0 0.0
    %612 = vmatprep.subr.mxu0 0.0
    %613 = vmatpush1.msra.mxu0 0.0
    %614 = vmatprep.subr.mxu0 0.0
    %615 = vmatpush1.msra.mxu0 0.0
    %616 = vmatprep.subr.mxu0 0.0
    %617 = vmatpush1.msra.mxu0 0.0
    %618 = vmatprep.mubr.f32.mxu0 0.0
    %619 = vmatmul.mubr.f32.gmra.mrb[0].mxu0 %v481
    %v620 = vpop.f32.mrb[0].mxu0
    %v621 = vadd.f32 0.0, %v620
    %v622 = vpop.f32.mrb[0].mxu0
    %v623 = vadd.f32 0.0, %v622
    %624 = vdwg.mxu0
    %v625 = vld [vmem:[%s4] sm:$0xff]
    %v626 = vld [vmem:[%s5] sm:$0xff]
    %v627 = vadd.f32 %v550, %v552
    %v628 = vadd.f32 %v627, %v621
    %v629 = vadd.f32 %v628, %v623
    %630 = vadd.xlane.f32.xlu0 %v629
    %v631 = vpop.xlane.xlu0 %630
    %v632 = vmul.f32 %v550, %v550
    %v633 = vmul.f32 %v552, %v552
    %v634 = vmul.f32 %v621, %v621
    %v635 = vmul.f32 %v623, %v623
    %v636 = vadd.f32 %v632, %v633
    %v637 = vadd.f32 %v636, %v634
    %v638 = vadd.f32 %v637, %v635
    %639 = vadd.xlane.f32.xlu0 %v638
    %v640 = vpop.xlane.xlu0 %639
    %v641 = vmul.f32 %v631, 0.001953125
    %v642 = vmul.f32 %v640, 0.001953125
    %v643 = vmul.f32 %v641, %v641
    %v644 = vsub.f32 %v642, %v643
    %v645 = vmax.f32 %v644, 0.0
    %v646 = vadd.f32 %v645, 1e-05
    %v647 = vrsqrt.pop %v646
    %v648 = vmul.f32 %v625, %v647
    %v649 = vmul.f32 %v641, %v648
    %v650 = vsub.f32 %v626, %v649
    %652 = vset.pattern.permute.xlu0 0
    %653 = vperm.xlu0 %652, %v648
    %v654 = vpop.permute.xlu0 %653
    %v656 = vmul.f32 %v550, %v654
    %v657 = vmul.f32 %v552, %v654
    %v658 = vmul.f32 %v621, %v654
    %v659 = vmul.f32 %v623, %v654
    %661 = vset.pattern.permute.xlu0 0
    %662 = vperm.xlu0 %661, %v650
    %v663 = vpop.permute.xlu0 %662
    %v665 = vadd.f32 %v656, %v663
    %v666 = vadd.f32 %v657, %v663
    %v667 = vadd.f32 %v658, %v663
    %v668 = vadd.f32 %v659, %v663
    %vm669 = vcmp.gt.f32.partialorder %v665, 0.0
    %vm670 = vcmp.gt.f32.partialorder %v666, 0.0
    %vm671 = vcmp.gt.f32.partialorder %v667, 0.0
    %vm672 = vcmp.gt.f32.partialorder %v668, 0.0
    %v673 = vmul.f32 %v665, 1.442695
    %v674 = vpow.pop %v673
    %v675 = vmul.f32 %v666, 1.442695
    %v676 = vpow.pop %v675
    %v677 = vmul.f32 %v667, 1.442695
    %v678 = vpow.pop %v677
    %v679 = vmul.f32 %v668, 1.442695
    %v680 = vpow.pop %v679
    %v681 = vsub.f32 %v674, 1.0
    %v682 = vsub.f32 %v676, 1.0
    %v683 = vsub.f32 %v678, 1.0
    %v684 = vsub.f32 %v680, 1.0
    %v685 = vsel %vm669, %v665, %v681
    %v686 = vsel %vm670, %v666, %v682
    %v687 = vsel %vm671, %v667, %v683
    %v688 = vsel %vm672, %v668, %v684
    %v689 = vld [vmem:[%s6] sm:$0xff]
    %694 = vrot.lane.b32.xlu0 %v685, 17
    %v695 = vpop.permute.xlu0 %694
    %696 = vrot.lane.b32.xlu0 %v686, 17
    %v697 = vpop.permute.xlu0 %696
    %698 = vrot.lane.b32.xlu0 %v687, 17
    %v699 = vpop.permute.xlu0 %698
    %700 = vrot.lane.b32.xlu0 %v688, 17
    %v701 = vpop.permute.xlu0 %700
    %v702 = vsel %vm133, %v124, %v695
    %v703 = vsel %vm133, %v695, %v697
    %v704 = vsel %vm133, %v697, %v699
    %v705 = vsel %vm133, %v699, %v701
    %v710 = vsel %vm114, %v702, 0.0
    %v711 = vsel %vm115, %v703, 0.0
    %v712 = vsel %vm116, %v704, 0.0
    %v713 = vsel %vm117, %v705, 0.0
    %714 = vrot.lane.b32.xlu0 %v685, 16
    %v715 = vpop.permute.xlu0 %714
    %716 = vrot.lane.b32.xlu0 %v686, 16
    %v717 = vpop.permute.xlu0 %716
    %718 = vrot.lane.b32.xlu0 %v687, 16
    %v719 = vpop.permute.xlu0 %718
    %720 = vrot.lane.b32.xlu0 %v688, 16
    %v721 = vpop.permute.xlu0 %720
    %v722 = vsel %vm177, %v168, %v715
    %v723 = vsel %vm177, %v715, %v717
    %v724 = vsel %vm177, %v717, %v719
    %v725 = vsel %vm177, %v719, %v721
    %v730 = vsel %vm163, %v722, 0.0
    %v731 = vsel %vm164, %v723, 0.0
    %v732 = vsel %vm165, %v724, 0.0
    %v733 = vsel %vm166, %v725, 0.0
    %734 = vrot.lane.b32.xlu0 %v685, 15
    %v735 = vpop.permute.xlu0 %734
    %736 = vrot.lane.b32.xlu0 %v686, 15
    %v737 = vpop.permute.xlu0 %736
    %738 = vrot.lane.b32.xlu0 %v687, 15
    %v739 = vpop.permute.xlu0 %738
    %740 = vrot.lane.b32.xlu0 %v688, 15
    %v741 = vpop.permute.xlu0 %740
    %v742 = vsel %vm221, %v212, %v735
    %v743 = vsel %vm221, %v735, %v737
    %v744 = vsel %vm221, %v737, %v739
    %v745 = vsel %vm221, %v739, %v741
    %v750 = vsel %vm207, %v742, 0.0
    %v751 = vsel %vm208, %v743, 0.0
    %v752 = vsel %vm209, %v744, 0.0
    %v753 = vsel %vm210, %v745, 0.0
    %754 = vrot.lane.b32.xlu0 %v685, 1
    %v755 = vpop.permute.xlu0 %754
    %756 = vrot.lane.b32.xlu0 %v686, 1
    %v757 = vpop.permute.xlu0 %756
    %758 = vrot.lane.b32.xlu0 %v687, 1
    %v759 = vpop.permute.xlu0 %758
    %760 = vrot.lane.b32.xlu0 %v688, 1
    %v761 = vpop.permute.xlu0 %760
    %v762 = vsel %vm265, %v256, %v755
    %v763 = vsel %vm265, %v755, %v757
    %v764 = vsel %vm265, %v757, %v759
    %v765 = vsel %vm265, %v759, %v761
    %v770 = vsel %vm251, %v762, 0.0
    %v771 = vsel %vm252, %v763, 0.0
    %v772 = vsel %vm253, %v764, 0.0
    %v773 = vsel %vm254, %v765, 0.0
    %v774 = vsel %vm295, %v685, 0.0
    %v775 = vsel %vm296, %v686, 0.0
    %v776 = vsel %vm297, %v687, 0.0
    %v777 = vsel %vm298, %v688, 0.0
    %778 = vrot.lane.b32.xlu0 %v685, 127
    %v779 = vpop.permute.xlu0 %778
    %780 = vrot.lane.b32.xlu0 %v686, 127
    %v781 = vpop.permute.xlu0 %780
    %782 = vrot.lane.b32.xlu0 %v687, 127
    %v783 = vpop.permute.xlu0 %782
    %784 = vrot.lane.b32.xlu0 %v688, 127
    %v785 = vpop.permute.xlu0 %784
    %v786 = vsel %vm334, %v779, %v781
    %v787 = vsel %vm334, %v781, %v783
    %v788 = vsel %vm334, %v783, %v785
    %v789 = vsel %vm334, %v785, %v333
    %v794 = vsel %vm320, %v786, 0.0
    %v795 = vsel %vm321, %v787, 0.0
    %v796 = vsel %vm322, %v788, 0.0
    %v797 = vsel %vm323, %v789, 0.0
    %798 = vrot.lane.b32.xlu0 %v685, 113
    %v799 = vpop.permute.xlu0 %798
    %800 = vrot.lane.b32.xlu0 %v686, 113
    %v801 = vpop.permute.xlu0 %800
    %802 = vrot.lane.b32.xlu0 %v687, 113
    %v803 = vpop.permute.xlu0 %802
    %804 = vrot.lane.b32.xlu0 %v688, 113
    %v805 = vpop.permute.xlu0 %804
    %v806 = vsel %vm378, %v799, %v801
    %v807 = vsel %vm378, %v801, %v803
    %v808 = vsel %vm378, %v803, %v805
    %v809 = vsel %vm378, %v805, %v377
    %v814 = vsel %vm364, %v806, 0.0
    %v815 = vsel %vm365, %v807, 0.0
    %v816 = vsel %vm366, %v808, 0.0
    %v817 = vsel %vm367, %v809, 0.0
    %818 = vrot.lane.b32.xlu0 %v685, 112
    %v819 = vpop.permute.xlu0 %818
    %820 = vrot.lane.b32.xlu0 %v686, 112
    %v821 = vpop.permute.xlu0 %820
    %822 = vrot.lane.b32.xlu0 %v687, 112
    %v823 = vpop.permute.xlu0 %822
    %824 = vrot.lane.b32.xlu0 %v688, 112
    %v825 = vpop.permute.xlu0 %824
    %v826 = vsel %vm422, %v819, %v821
    %v827 = vsel %vm422, %v821, %v823
    %v828 = vsel %vm422, %v823, %v825
    %v829 = vsel %vm422, %v825, %v421
    %v834 = vsel %vm408, %v826, 0.0
    %v835 = vsel %vm409, %v827, 0.0
    %v836 = vsel %vm410, %v828, 0.0
    %v837 = vsel %vm411, %v829, 0.0
    %838 = vrot.lane.b32.xlu0 %v685, 111
    %v839 = vpop.permute.xlu0 %838
    %840 = vrot.lane.b32.xlu0 %v686, 111
    %v841 = vpop.permute.xlu0 %840
    %842 = vrot.lane.b32.xlu0 %v687, 111
    %v843 = vpop.permute.xlu0 %842
    %844 = vrot.lane.b32.xlu0 %v688, 111
    %v845 = vpop.permute.xlu0 %844
    %v846 = vsel %vm466, %v839, %v841
    %v847 = vsel %vm466, %v841, %v843
    %v848 = vsel %vm466, %v843, %v845
    %v849 = vsel %vm466, %v845, %v465
    %v854 = vsel %vm452, %v846, 0.0
    %v855 = vsel %vm453, %v847, 0.0
    %v856 = vsel %vm454, %v848, 0.0
    %v857 = vsel %vm455, %v849, 0.0
    %v859 = vsel %vm479, %v689, 0
    %861 = vmatprep.subr.mxu0 %v711
    %862 = vmatpush1.msra.mxu0 %v710
    %863 = vmatprep.subr.mxu0 %v731
    %864 = vmatpush1.msra.mxu0 %v730
    %865 = vmatprep.subr.mxu0 %v751
    %866 = vmatpush1.msra.mxu0 %v750
    %867 = vmatprep.subr.mxu0 %v771
    %868 = vmatpush1.msra.mxu0 %v770
    %869 = vmatprep.subr.mxu0 %v775
    %870 = vmatpush1.msra.mxu0 %v774
    %871 = vmatprep.subr.mxu0 %v795
    %872 = vmatpush1.msra.mxu0 %v794
    %873 = vmatprep.subr.mxu0 %v815
    %874 = vmatpush1.msra.mxu0 %v814
    %875 = vmatprep.subr.mxu0 %v835
    %876 = vmatpush1.msra.mxu0 %v834
    %877 = vmatprep.subr.mxu0 %v855
    %878 = vmatpush1.msra.mxu0 %v854
    %879 = vmatprep.subr.mxu0 0.0
    %880 = vmatpush1.msra.mxu0 0.0
    %881 = vmatprep.subr.mxu0 0.0
    %882 = vmatpush1.msra.mxu0 0.0
    %883 = vmatprep.subr.mxu0 0.0
    %884 = vmatpush1.msra.mxu0 0.0
    %885 = vmatprep.subr.mxu0 0.0
    %886 = vmatpush1.msra.mxu0 0.0
    %887 = vmatprep.subr.mxu0 0.0
    %888 = vmatpush1.msra.mxu0 0.0
    %889 = vmatprep.subr.mxu0 0.0
    %890 = vmatpush1.msra.mxu0 0.0
    %891 = vmatprep.subr.mxu0 0.0
    %892 = vmatpush1.msra.mxu0 0.0
    %893 = vmatprep.subr.mxu0 0.0
    %894 = vmatpush1.msra.mxu0 0.0
    %895 = vmatprep.subr.mxu0 0.0
    %896 = vmatpush1.msra.mxu0 0.0
    %897 = vmatprep.subr.mxu0 0.0
    %898 = vmatpush1.msra.mxu0 0.0
    %899 = vmatprep.subr.mxu0 0.0
    %900 = vmatpush1.msra.mxu0 0.0
    %901 = vmatprep.subr.mxu0 0.0
    %902 = vmatpush1.msra.mxu0 0.0
    %903 = vmatprep.subr.mxu0 0.0
    %904 = vmatpush1.msra.mxu0 0.0
    %905 = vmatprep.subr.mxu0 0.0
    %906 = vmatpush1.msra.mxu0 0.0
    %907 = vmatprep.subr.mxu0 0.0
    %908 = vmatpush1.msra.mxu0 0.0
    %909 = vmatprep.subr.mxu0 0.0
    %910 = vmatpush1.msra.mxu0 0.0
    %911 = vmatprep.subr.mxu0 0.0
    %912 = vmatpush1.msra.mxu0 0.0
    %913 = vmatprep.subr.mxu0 0.0
    %914 = vmatpush1.msra.mxu0 0.0
    %915 = vmatprep.subr.mxu0 0.0
    %916 = vmatpush1.msra.mxu0 0.0
    %917 = vmatprep.subr.mxu0 0.0
    %918 = vmatpush1.msra.mxu0 0.0
    %919 = vmatprep.subr.mxu0 0.0
    %920 = vmatpush1.msra.mxu0 0.0
    %921 = vmatprep.subr.mxu0 0.0
    %922 = vmatpush1.msra.mxu0 0.0
    %923 = vmatprep.subr.mxu0 0.0
    %924 = vmatpush1.msra.mxu0 0.0
    %925 = vmatprep.mubr.f32.mxu0 0.0
    %926 = vmatmul.mubr.f32.gmra.mrb[0].mxu0 %v859
    %v927 = vpop.f32.mrb[0].mxu0
    %v928 = vadd.f32 0.0, %v927
    %v929 = vpop.f32.mrb[0].mxu0
    %v930 = vadd.f32 0.0, %v929
    %931 = vdwg.mxu0
    %932 = vmatprep.subr.mxu0 %v713
    %933 = vmatpush1.msra.mxu0 %v712
    %934 = vmatprep.subr.mxu0 %v733
    %935 = vmatpush1.msra.mxu0 %v732
    %936 = vmatprep.subr.mxu0 %v753
    %937 = vmatpush1.msra.mxu0 %v752
    %938 = vmatprep.subr.mxu0 %v773
    %939 = vmatpush1.msra.mxu0 %v772
    %940 = vmatprep.subr.mxu0 %v777
    %941 = vmatpush1.msra.mxu0 %v776
    %942 = vmatprep.subr.mxu0 %v797
    %943 = vmatpush1.msra.mxu0 %v796
    %944 = vmatprep.subr.mxu0 %v817
    %945 = vmatpush1.msra.mxu0 %v816
    %946 = vmatprep.subr.mxu0 %v837
    %947 = vmatpush1.msra.mxu0 %v836
    %948 = vmatprep.subr.mxu0 %v857
    %949 = vmatpush1.msra.mxu0 %v856
    %950 = vmatprep.subr.mxu0 0.0
    %951 = vmatpush1.msra.mxu0 0.0
    %952 = vmatprep.subr.mxu0 0.0
    %953 = vmatpush1.msra.mxu0 0.0
    %954 = vmatprep.subr.mxu0 0.0
    %955 = vmatpush1.msra.mxu0 0.0
    %956 = vmatprep.subr.mxu0 0.0
    %957 = vmatpush1.msra.mxu0 0.0
    %958 = vmatprep.subr.mxu0 0.0
    %959 = vmatpush1.msra.mxu0 0.0
    %960 = vmatprep.subr.mxu0 0.0
    %961 = vmatpush1.msra.mxu0 0.0
    %962 = vmatprep.subr.mxu0 0.0
    %963 = vmatpush1.msra.mxu0 0.0
    %964 = vmatprep.subr.mxu0 0.0
    %965 = vmatpush1.msra.mxu0 0.0
    %966 = vmatprep.subr.mxu0 0.0
    %967 = vmatpush1.msra.mxu0 0.0
    %968 = vmatprep.subr.mxu0 0.0
    %969 = vmatpush1.msra.mxu0 0.0
    %970 = vmatprep.subr.mxu0 0.0
    %971 = vmatpush1.msra.mxu0 0.0
    %972 = vmatprep.subr.mxu0 0.0
    %973 = vmatpush1.msra.mxu0 0.0
    %974 = vmatprep.subr.mxu0 0.0
    %975 = vmatpush1.msra.mxu0 0.0
    %976 = vmatprep.subr.mxu0 0.0
    %977 = vmatpush1.msra.mxu0 0.0
    %978 = vmatprep.subr.mxu0 0.0
    %979 = vmatpush1.msra.mxu0 0.0
    %980 = vmatprep.subr.mxu0 0.0
    %981 = vmatpush1.msra.mxu0 0.0
    %982 = vmatprep.subr.mxu0 0.0
    %983 = vmatpush1.msra.mxu0 0.0
    %984 = vmatprep.subr.mxu0 0.0
    %985 = vmatpush1.msra.mxu0 0.0
    %986 = vmatprep.subr.mxu0 0.0
    %987 = vmatpush1.msra.mxu0 0.0
    %988 = vmatprep.subr.mxu0 0.0
    %989 = vmatpush1.msra.mxu0 0.0
    %990 = vmatprep.subr.mxu0 0.0
    %991 = vmatpush1.msra.mxu0 0.0
    %992 = vmatprep.subr.mxu0 0.0
    %993 = vmatpush1.msra.mxu0 0.0
    %994 = vmatprep.subr.mxu0 0.0
    %995 = vmatpush1.msra.mxu0 0.0
    %996 = vmatprep.mubr.f32.mxu0 0.0
    %997 = vmatmul.mubr.f32.gmra.mrb[0].mxu0 %v859
    %v998 = vpop.f32.mrb[0].mxu0
    %v999 = vadd.f32 0.0, %v998
    %v1000 = vpop.f32.mrb[0].mxu0
    %v1001 = vadd.f32 0.0, %v1000
    %1002 = vdwg.mxu0
    %v1003 = vld [vmem:[%s7] sm:$0xff]
    %v1004 = vld [vmem:[%s8] sm:$0xff]
    %v1005 = vadd.f32 %v928, %v930
    %v1006 = vadd.f32 %v1005, %v999
    %v1007 = vadd.f32 %v1006, %v1001
    %1008 = vadd.xlane.f32.xlu0 %v1007
    %v1009 = vpop.xlane.xlu0 %1008
    %v1010 = vmul.f32 %v928, %v928
    %v1011 = vmul.f32 %v930, %v930
    %v1012 = vmul.f32 %v999, %v999
    %v1013 = vmul.f32 %v1001, %v1001
    %v1014 = vadd.f32 %v1010, %v1011
    %v1015 = vadd.f32 %v1014, %v1012
    %v1016 = vadd.f32 %v1015, %v1013
    %1017 = vadd.xlane.f32.xlu0 %v1016
    %v1018 = vpop.xlane.xlu0 %1017
    %v1019 = vmul.f32 %v1009, 0.001953125
    %v1020 = vmul.f32 %v1018, 0.001953125
    %v1021 = vmul.f32 %v1019, %v1019
    %v1022 = vsub.f32 %v1020, %v1021
    %v1023 = vmax.f32 %v1022, 0.0
    %v1024 = vadd.f32 %v1023, 1e-05
    %v1025 = vrsqrt.pop %v1024
    %v1026 = vmul.f32 %v1003, %v1025
    %v1027 = vmul.f32 %v1019, %v1026
    %v1028 = vsub.f32 %v1004, %v1027
    %1030 = vset.pattern.permute.xlu0 0
    %1031 = vperm.xlu0 %1030, %v1026
    %v1032 = vpop.permute.xlu0 %1031
    %v1034 = vmul.f32 %v928, %v1032
    %v1035 = vmul.f32 %v930, %v1032
    %v1036 = vmul.f32 %v999, %v1032
    %v1037 = vmul.f32 %v1001, %v1032
    %1039 = vset.pattern.permute.xlu0 0
    %1040 = vperm.xlu0 %1039, %v1028
    %v1041 = vpop.permute.xlu0 %1040
    %v1043 = vadd.f32 %v1034, %v1041
    %v1044 = vadd.f32 %v1035, %v1041
    %v1045 = vadd.f32 %v1036, %v1041
    %v1046 = vadd.f32 %v1037, %v1041
    %vm1047 = vcmp.gt.f32.partialorder %v1043, 0.0
    %vm1048 = vcmp.gt.f32.partialorder %v1044, 0.0
    %vm1049 = vcmp.gt.f32.partialorder %v1045, 0.0
    %vm1050 = vcmp.gt.f32.partialorder %v1046, 0.0
    %v1051 = vmul.f32 %v1043, 1.442695
    %v1052 = vpow.pop %v1051
    %v1053 = vmul.f32 %v1044, 1.442695
    %v1054 = vpow.pop %v1053
    %v1055 = vmul.f32 %v1045, 1.442695
    %v1056 = vpow.pop %v1055
    %v1057 = vmul.f32 %v1046, 1.442695
    %v1058 = vpow.pop %v1057
    %v1059 = vsub.f32 %v1052, 1.0
    %v1060 = vsub.f32 %v1054, 1.0
    %v1061 = vsub.f32 %v1056, 1.0
    %v1062 = vsub.f32 %v1058, 1.0
    %v1063 = vsel %vm1047, %v1043, %v1059
    %v1064 = vsel %vm1048, %v1044, %v1060
    %v1065 = vsel %vm1049, %v1045, %v1061
    %v1066 = vsel %vm1050, %v1046, %v1062
    %v1067 = vadd.f32 %v1063, %v92
    %v1068 = vadd.f32 %v1064, %v93
    %v1069 = vadd.f32 %v1065, %v94
    %v1070 = vadd.f32 %v1066, %v95
    %1071 = vst [vmem:[#allocation7] sm:$0xff] %v1067
    %1072 = vst [vmem:[#allocation7 + $0x8] sm:$0xff] %v1068
    %1073 = vst [vmem:[#allocation7 + $0x10] sm:$0xff] %v1069
    %1074 = vst [vmem:[#allocation7 + $0x18] sm:$0xff] %v1070
    // Predicated region
    $region46: #{tpu_custom_call.1} parent=1 // pred_check
      _
    $region47: #{tpu_custom_call.1} parent=1 // pred_check_branch
      %1076 = sbr.rel (0) target = $region49
    $region48: #{tpu_custom_call.1} parent=1 // pred_region
      %s1078 = ssub.s32 512, 512
      %1079 = vsyncadd [#allocation4], %s1078
      %s1081 = sshll.u32 [#allocation7], 4
      %s1082 = int_to_ptr.vmem [resolvable:$true] %s1081
      %1084 = dma.vmem_to_hbm [thread:$0]  %s1082, 512, %s9, [#allocation4]
    $region49: #{tpu_custom_call.1} parent=1 // pred_fallthru
      _
    // Predicated region
    $region50: #{tpu_custom_call.1} parent=1 // pred_check
      _
    $region51: #{tpu_custom_call.1} parent=1 // pred_check_branch
      %1086 = sbr.rel (0) target = $region53
    $region52: #{tpu_custom_call.1} parent=1 // pred_region
      %1087 = dma.done [#allocation4], 512
    $region53: #{tpu_custom_call.1} parent=1 // pred_fallthru
      _
    %1088 = vsyncpa [#allocation3], 1
    %1089 = vsyncpa [#allocation6], 1
    %1090 = vsyncpa [#allocation4], 1

</llo_original>
